<compile_context>
chip_gen: v6e
topology: v6e:2x2x1
jax: 0.10.0
libtpu: 0.0.40
codegen_flags: <defaults>
</compile_context>

<pallas_src>
import functools
import math

import jax
import jax.numpy as jnp
from jax.experimental import pallas as pl
from jax.experimental.pallas import tpu as pltpu


def patchify(x, size):
    """Pure-JAX mirror of the PyTorch patchify (used only by the reference)."""
    b, h, w, d = x.shape
    x = x.reshape(b, h // size, size, w // size, size, d)
    x = jnp.transpose(x, (0, 1, 3, 2, 4, 5))
    return x.reshape(b, h // size, w // size, size * size * d)


def _patch_merge_kernel(x_ref, w_ref, cs_ref, b_ref, o_ref, *, ws, w_tok, eps):
    """Fused patchify + LayerNorm + bias-free Linear (one row-block per step).

    x_ref : (tm*ws, ws*C)  tm = th*w_tok output tokens; row order (t, r, j)
            with t = window-row in block, r = row-in-window, j = window-col.
    w_ref : (F, out_pad) bf16   gamma[:, None] * W, zero-padded columns.
    cs_ref: (1, out_pad) f32    column sums of w_ref (deferred centering).
    b_ref : (1, out_pad) f32    beta @ W (LN shift folded into the linear).
    o_ref : (tm, out_pad)
    """
    rows, wsc = x_ref.shape
    tm = rows // ws
    th = tm // w_tok
    f = ws * wsc

    # Free regrouping of the contiguous block: (t, r, j) rows -> 4D view.
    x4 = x_ref[...].reshape(th, ws, w_tok, wsc)

    acc = jnp.zeros(o_ref.shape, jnp.float32)       # f32 MXU accumulator
    s = jnp.zeros((tm, 1), jnp.float32)             # sum(x)   (LN stats, f32)
    ss = jnp.zeros((tm, 1), jnp.float32)            # sum(x*x)
    for r in range(ws):                             # static unroll, ws is tiny
        chunk = x4[:, r].reshape(tm, wsc)           # (tm, ws*C), input dtype
        c32 = chunk.astype(jnp.float32)
        s = s + jnp.sum(c32, axis=-1, keepdims=True)
        ss = ss + jnp.sum(c32 * c32, axis=-1, keepdims=True)
        acc = acc + jnp.dot(chunk.astype(jnp.bfloat16),
                            w_ref[r * wsc:(r + 1) * wsc, :],
                            preferred_element_type=jnp.float32)

    inv_f = 1.0 / float(f)
    mean = s * inv_f
    var = ss * inv_f - mean * mean                  # single-pass LN stats
    inv_std = jax.lax.rsqrt(var + eps)
    # ((x - mean) * inv_std) @ Wf == inv_std * (x @ Wf - mean * colsum(Wf))
    out = (acc - mean * cs_ref[...]) * inv_std + b_ref[...]
    o_ref[...] = out.astype(o_ref.dtype)


def _pick_row_tile(n_wrows, w_tok, target_tokens, prefer_blocks=2):
    """Window-rows per grid step.

    Prefers exact divisors of n_wrows (no ragged/masked last block) whose block
    count is a multiple of `prefer_blocks` so v7x's two TensorCores get an even
    split; keeps the output sublane dim (th * w_tok) a multiple of 8.
    """
    align = 8 // math.gcd(w_tok, 8)          # smallest th with th*w_tok % 8 == 0
    cap = max(align, (max(1, target_tokens // w_tok) // align) * align)
    cap = min(cap, n_wrows)
    best = None
    for th in range(cap, 0, -1):
        if th % align and th != n_wrows:
            continue
        if n_wrows % th:
            continue
        if best is None:
            best = th
        nb = n_wrows // th
        if nb >= prefer_blocks and nb % prefer_blocks == 0:
            return th
    if best is not None:
        return best
    # No aligned divisor <= cap: ragged tail (masked last block) as fallback.
    return max(align, (cap // align) * align)


@functools.partial(
    jax.jit,
    static_argnames=("window_size", "eps", "row_tile_tokens", "out_dtype",
                     "single_buffer_consts"))
def _patch_merge_impl(x, gamma, beta, weight, window_size, eps,
                      row_tile_tokens, out_dtype, single_buffer_consts):
    b, h, w, c = x.shape
    ws = window_size
    if h % ws or w % ws:
        raise ValueError("H and W must be divisible by window_size")
    wsc = ws * c                        # lane width of one within-window row chunk
    f = ws * wsc                        # LayerNorm / contraction size
    out_dim = weight.shape[1]
    out_dtype = jnp.dtype(out_dtype)
    out_pad = ((out_dim + 127) // 128) * 128     # lane-dense stores
    w_tok = w // ws                     # output tokens per spatial row
    n_wrows = (b * h) // ws             # window-rows across the whole batch
    n_tok = n_wrows * w_tok             # total output tokens

    # ---- one-time constant folding (tiny, outside the hot loop) -------------
    w32 = weight.astype(jnp.float32)
    wf = (gamma.astype(jnp.float32)[:, None] * w32).astype(jnp.bfloat16)
    colsum = jnp.sum(wf.astype(jnp.float32), axis=0, keepdims=True)  # of bf16 Wf
    bias = (beta.astype(jnp.float32) @ w32).reshape(1, out_dim)
    if out_pad != out_dim:
        padc = ((0, 0), (0, out_pad - out_dim))
        wf, colsum, bias = jnp.pad(wf, padc), jnp.pad(colsum, padc), jnp.pad(bias, padc)

    # ---- free relayout: (B,H,W,C) -> (B*H*W/ws, ws*C), rows = (row, wcol) ----
    xr = x.reshape(b * h * w_tok, wsc)

    # ---- tile selection keyed off this chip's VMEM --------------------------
    try:
        vmem_cap = int(pltpu.get_tpu_info().vmem_capacity_bytes)
    except Exception:
        vmem_cap = 64 << 20
    if vmem_cap >= (96 << 20):          # v5e / v6e: 128 MiB physical VMEM
        tile_budget, limit_cap = 40 << 20, 96 << 20
    else:                               # v7x: 64 MiB physical VMEM
        tile_budget, limit_cap = 16 << 20, 48 << 20

    n_const_buf = 1 if single_buffer_consts else 2
    const_bytes = n_const_buf * (f * out_pad * 2 + 2 * out_pad * 4)
    per_tok = (2 * f * x.dtype.itemsize                    # double-buffered input
               + out_pad * (2 * out_dtype.itemsize + 4)    # out blocks + f32 acc
               + (f // ws) * 12)                           # transient chunk temps
    tok_cap = max(w_tok, int((tile_budget - const_bytes) // per_tok))
    th = _pick_row_tile(n_wrows, w_tok, int(min(row_tile_tokens, tok_cap)))
    tm = th * w_tok
    n_blocks = pl.cdiv(n_wrows, th)

    est = (2 * tm * f * x.dtype.itemsize + 2 * tm * out_pad * out_dtype.itemsize
           + tm * out_pad * 4 + tm * (f // ws) * 12 + const_bytes + (2 << 20))
    vmem_limit = int(min(limit_cap, max(32 << 20, est)))

    if single_buffer_consts:
        def const_spec(shape):
            return pl.BlockSpec(shape, lambda i: (0, 0),
                                pipeline_mode=pl.Buffered(1))
    else:
        def const_spec(shape):
            return pl.BlockSpec(shape, lambda i: (0, 0))

    out_flat = pl.pallas_call(
        functools.partial(_patch_merge_kernel, ws=ws, w_tok=w_tok, eps=eps),
        out_shape=jax.ShapeDtypeStruct((n_tok, out_pad), out_dtype),
        grid_spec=pltpu.PrefetchScalarGridSpec(
            num_scalar_prefetch=0,
            grid=(n_blocks,),
            in_specs=[
                # th window-rows = one contiguous, sublane-dense HBM slab/step.
                pl.BlockSpec((tm * ws, wsc), lambda i: (i, 0)),
                const_spec((f, out_pad)),      # folded weight (bf16), resident
                const_spec((1, out_pad)),      # colsum(Wf), f32
                const_spec((1, out_pad)),      # beta @ W,   f32
            ],
            out_specs=pl.BlockSpec((tm, out_pad), lambda i: (i, 0)),
        ),
        compiler_params=pltpu.CompilerParams(
            dimension_semantics=("parallel",),
            vmem_limit_bytes=vmem_limit,
        ),
    )(xr, wf, colsum, bias)

    if out_pad != out_dim:
        out_flat = out_flat[:, :out_dim]
    return out_flat.reshape(b, h // ws, w // ws, out_dim)


def patch_merge(x, gamma, beta, weight, window_size, *, eps=1e-5,
                row_tile_tokens=2048, out_dtype=None):
    """x: (B, H, W, C) channels-last; weight: (F, out_dim), F = C*ws*ws.

    Pass bf16 `x` (and leave out_dtype=None) in a real network to halve the
    HBM traffic of this memory-bound op; LN statistics and the matmul
    accumulation always run in f32.
    """
    dt = jnp.dtype(out_dtype) if out_dtype is not None else jnp.dtype(x.dtype)
    args = (x, gamma, beta, weight)
    kwargs = dict(window_size=int(window_size), eps=float(eps),
                  row_tile_tokens=int(row_tile_tokens), out_dtype=dt.name)
    try:
        out = _patch_merge_impl(*args, single_buffer_consts=True, **kwargs)
        return jax.block_until_ready(out)
    except Exception:
        # Fallback for jax builds without BlockSpec(pipeline_mode=Buffered(1)):
        # default double-buffered constant operands (still DMA-elided).
        out = _patch_merge_impl(*args, single_buffer_consts=False, **kwargs)
        return jax.block_until_ready(out)


def _reference(x, gamma, beta, weight, window_size, eps=1e-5):
    merged = patchify(x.astype(jnp.float32), window_size)
    mean = jnp.mean(merged, axis=-1, keepdims=True)
    var = jnp.mean((merged - mean) ** 2, axis=-1, keepdims=True)
    xn = (merged - mean) / jnp.sqrt(var + eps)
    xn = xn * gamma + beta
    return jnp.einsum("bhwf,fo->bhwo", xn, weight)


if __name__ == "__main__":
    key = jax.random.PRNGKey(0)
    k_x, k_g, k_b, k_w = jax.random.split(key, 4)

    batch, in_dim, hw, window_size, out_dim = 2, 4, 16, 2, 32
    f = in_dim * window_size * window_size          # 16

    x = jax.random.normal(k_x, (batch, hw, hw, in_dim), dtype=jnp.float32)
    gamma = 1.0 + 0.1 * jax.random.normal(k_g, (f,), dtype=jnp.float32)
    beta = 0.1 * jax.random.normal(k_b, (f,), dtype=jnp.float32)
    weight = jax.random.normal(k_w, (f, out_dim), dtype=jnp.float32) / jnp.sqrt(f)

    # f32-activation path (numerics check against an all-f32 reference).
    out = patch_merge(x, gamma, beta, weight, window_size=window_size)
    out = jax.block_until_ready(out)
    ref = _reference(x, gamma, beta, weight, window_size)
    assert out.shape == (batch, hw // window_size, hw // window_size, out_dim)
    assert out.dtype == x.dtype
    err = float(jnp.max(jnp.abs(out - ref)))
    assert jnp.allclose(out, ref, atol=5e-2, rtol=5e-2), f"f32 max abs err {err}"

    # bf16 end-to-end path (what a real network should feed this kernel).
    xb = x.astype(jnp.bfloat16)
    out_b = patch_merge(xb, gamma, beta, weight, window_size=window_size)
    out_b = jax.block_until_ready(out_b)
    ref_b = _reference(xb, gamma, beta, weight, window_size)  # ref on rounded input
    assert out_b.dtype == jnp.bfloat16
    err_b = float(jnp.max(jnp.abs(out_b.astype(jnp.float32) - ref_b)))
    assert err_b < 1.5e-1, f"bf16 max abs err {err_b}"

    print("KERNEL_OK")
</pallas_src>

<mosaic_0001>
module attributes {stable_mosaic.version = 11 : i64} {
  func.func @_patch_merge_kernel(%arg0: i32, %arg1: memref<128x8xf32, #tpu.memory_space<vmem>>, %arg2: memref<16x128xbf16, #tpu.memory_space<vmem>>, %arg3: memref<1x128xf32, #tpu.memory_space<vmem>>, %arg4: memref<1x128xf32, #tpu.memory_space<vmem>>, %arg5: memref<64x128xf32, #tpu.memory_space<vmem>>) attributes {dimension_semantics = [#tpu.dimension_semantics<parallel>], iteration_bounds = array<i64: 2>, scalar_prefetch = 0 : i64, scratch_operands = 0 : i64, tpu.core_type = #tpu.core_type<tc>, window_params = [{transform_indices = @transform_0, window_bounds = array<i64: 128, 8>}, {pipeline_mode = #tpu.pipeline_mode<synchronous>, transform_indices = @transform_1, window_bounds = array<i64: 16, 128>}, {pipeline_mode = #tpu.pipeline_mode<synchronous>, transform_indices = @transform_2, window_bounds = array<i64: 1, 128>}, {pipeline_mode = #tpu.pipeline_mode<synchronous>, transform_indices = @transform_3, window_bounds = array<i64: 1, 128>}, {transform_indices = @transform_4, window_bounds = array<i64: 64, 128>}]} {
    %c0 = arith.constant 0 : index
    %c0_0 = arith.constant 0 : index
    %0 = vector.load %arg1[%c0, %c0_0] : memref<128x8xf32, #tpu.memory_space<vmem>>, vector<128x8xf32>
    %1 = vector.shape_cast %0 : vector<128x8xf32> to vector<8x2x8x8xf32>
    %cst = arith.constant 0.000000e+00 : f32
    %2 = vector.broadcast %cst : f32 to vector<64x128xf32>
    %cst_1 = arith.constant 0.000000e+00 : f32
    %3 = vector.broadcast %cst_1 : f32 to vector<64x1xf32>
    %cst_2 = arith.constant 0.000000e+00 : f32
    %4 = vector.broadcast %cst_2 : f32 to vector<64x1xf32>
    %5 = vector.extract_strided_slice %1 {offsets = [0, 0, 0, 0], sizes = [8, 1, 8, 8], strides = [1, 1, 1, 1]} : vector<8x2x8x8xf32> to vector<8x1x8x8xf32>
    %6 = vector.shape_cast %5 : vector<8x1x8x8xf32> to vector<8x8x8xf32>
    %7 = vector.shape_cast %6 : vector<8x8x8xf32> to vector<64x8xf32>
    %cst_3 = arith.constant dense<0.000000e+00> : vector<64xf32>
    %8 = vector.multi_reduction <add>, %7, %cst_3 [1] : vector<64x8xf32> to vector<64xf32>
    %9 = vector.shape_cast %8 : vector<64xf32> to vector<64x1xf32>
    %10 = arith.addf %3, %9 : vector<64x1xf32>
    %11 = arith.mulf %7, %7 : vector<64x8xf32>
    %cst_4 = arith.constant dense<0.000000e+00> : vector<64xf32>
    %12 = vector.multi_reduction <add>, %11, %cst_4 [1] : vector<64x8xf32> to vector<64xf32>
    %13 = vector.shape_cast %12 : vector<64xf32> to vector<64x1xf32>
    %14 = arith.addf %4, %13 : vector<64x1xf32>
    %15 = arith.truncf %7 : vector<64x8xf32> to vector<64x8xbf16>
    %c0_5 = arith.constant 0 : index
    %c0_6 = arith.constant 0 : index
    %16 = vector.load %arg2[%c0_5, %c0_6] : memref<16x128xbf16, #tpu.memory_space<vmem>>, vector<8x128xbf16>
    %cst_7 = arith.constant dense<0.000000e+00> : vector<64x128xf32>
    %17 = tpu.matmul %15, %16, %cst_7 {dimension_numbers = #tpu.dot_dimension_numbers<[1], [0], [0], [1], [0, 0, 1, 1], [], []>} : vector<64x8xbf16>, vector<8x128xbf16>, vector<64x128xf32> -> vector<64x128xf32>
    %18 = arith.addf %2, %17 : vector<64x128xf32>
    %19 = vector.extract_strided_slice %1 {offsets = [0, 1, 0, 0], sizes = [8, 1, 8, 8], strides = [1, 1, 1, 1]} : vector<8x2x8x8xf32> to vector<8x1x8x8xf32>
    %20 = vector.shape_cast %19 : vector<8x1x8x8xf32> to vector<8x8x8xf32>
    %21 = vector.shape_cast %20 : vector<8x8x8xf32> to vector<64x8xf32>
    %cst_8 = arith.constant dense<0.000000e+00> : vector<64xf32>
    %22 = vector.multi_reduction <add>, %21, %cst_8 [1] : vector<64x8xf32> to vector<64xf32>
    %23 = vector.shape_cast %22 : vector<64xf32> to vector<64x1xf32>
    %24 = arith.addf %10, %23 : vector<64x1xf32>
    %25 = arith.mulf %21, %21 : vector<64x8xf32>
    %cst_9 = arith.constant dense<0.000000e+00> : vector<64xf32>
    %26 = vector.multi_reduction <add>, %25, %cst_9 [1] : vector<64x8xf32> to vector<64xf32>
    %27 = vector.shape_cast %26 : vector<64xf32> to vector<64x1xf32>
    %28 = arith.addf %14, %27 : vector<64x1xf32>
    %29 = arith.truncf %21 : vector<64x8xf32> to vector<64x8xbf16>
    %c8 = arith.constant 8 : index
    %c0_10 = arith.constant 0 : index
    %30 = vector.load %arg2[%c8, %c0_10] : memref<16x128xbf16, #tpu.memory_space<vmem>>, vector<8x128xbf16>
    %cst_11 = arith.constant dense<0.000000e+00> : vector<64x128xf32>
    %31 = tpu.matmul %29, %30, %cst_11 {dimension_numbers = #tpu.dot_dimension_numbers<[1], [0], [0], [1], [0, 0, 1, 1], [], []>} : vector<64x8xbf16>, vector<8x128xbf16>, vector<64x128xf32> -> vector<64x128xf32>
    %32 = arith.addf %18, %31 : vector<64x128xf32>
    %cst_12 = arith.constant 6.250000e-02 : f32
    %33 = vector.broadcast %cst_12 : f32 to vector<64x1xf32>
    %34 = arith.mulf %24, %33 : vector<64x1xf32>
    %cst_13 = arith.constant 6.250000e-02 : f32
    %35 = vector.broadcast %cst_13 : f32 to vector<64x1xf32>
    %36 = arith.mulf %28, %35 : vector<64x1xf32>
    %37 = arith.mulf %34, %34 : vector<64x1xf32>
    %38 = arith.subf %36, %37 : vector<64x1xf32>
    %cst_14 = arith.constant 9.99999974E-6 : f32
    %39 = vector.broadcast %cst_14 : f32 to vector<64x1xf32>
    %40 = arith.addf %38, %39 : vector<64x1xf32>
    %41 = math.rsqrt %40 : vector<64x1xf32>
    %c0_15 = arith.constant 0 : index
    %c0_16 = arith.constant 0 : index
    %42 = vector.load %arg3[%c0_15, %c0_16] : memref<1x128xf32, #tpu.memory_space<vmem>>, vector<1x128xf32>
    %43 = vector.broadcast %34 : vector<64x1xf32> to vector<64x128xf32>
    %44 = vector.broadcast %42 : vector<1x128xf32> to vector<64x128xf32>
    %45 = arith.mulf %43, %44 : vector<64x128xf32>
    %46 = arith.subf %32, %45 : vector<64x128xf32>
    %47 = vector.broadcast %41 : vector<64x1xf32> to vector<64x128xf32>
    %48 = arith.mulf %46, %47 : vector<64x128xf32>
    %c0_17 = arith.constant 0 : index
    %c0_18 = arith.constant 0 : index
    %49 = vector.load %arg4[%c0_17, %c0_18] : memref<1x128xf32, #tpu.memory_space<vmem>>, vector<1x128xf32>
    %50 = vector.broadcast %49 : vector<1x128xf32> to vector<64x128xf32>
    %51 = arith.addf %48, %50 : vector<64x128xf32>
    %c0_19 = arith.constant 0 : index
    %c0_20 = arith.constant 0 : index
    %52 = vector.load %arg5[%c0_19, %c0_20] : memref<64x128xf32, #tpu.memory_space<vmem>>, vector<64x128xf32>
    tpu.vector_store %arg5[%c0_19, %c0_20], %51 {strides = array<i32>} : memref<64x128xf32, #tpu.memory_space<vmem>>, vector<64x128xf32>,
    return
  }
  func.func @transform_0(%arg0: i32) -> (i32, i32) {
    %c0_i32 = arith.constant 0 : i32
    %c0_i32_0 = arith.constant 0 : i32
    return %arg0, %c0_i32 : i32, i32
  }
  func.func @transform_1(%arg0: i32) -> (i32, i32) {
    %c0_i32 = arith.constant 0 : i32
    %c0_i32_0 = arith.constant 0 : i32
    %c0_i32_1 = arith.constant 0 : i32
    return %c0_i32, %c0_i32_0 : i32, i32
  }
  func.func @transform_2(%arg0: i32) -> (i32, i32) {
    %c0_i32 = arith.constant 0 : i32
    %c0_i32_0 = arith.constant 0 : i32
    %c0_i32_1 = arith.constant 0 : i32
    return %c0_i32, %c0_i32_0 : i32, i32
  }
  func.func @transform_3(%arg0: i32) -> (i32, i32) {
    %c0_i32 = arith.constant 0 : i32
    %c0_i32_0 = arith.constant 0 : i32
    %c0_i32_1 = arith.constant 0 : i32
    return %c0_i32, %c0_i32_0 : i32, i32
  }
  func.func @transform_4(%arg0: i32) -> (i32, i32) {
    %c0_i32 = arith.constant 0 : i32
    %c0_i32_0 = arith.constant 0 : i32
    return %arg0, %c0_i32 : i32, i32
  }
}

module attributes {stable_mosaic.version = 11 : i64} {
  func.func @_patch_merge_kernel(%arg0: i32, %arg1: memref<128x8xf32, #tpu.memory_space<vmem>>, %arg2: memref<16x128xbf16, #tpu.memory_space<vmem>>, %arg3: memref<1x128xf32, #tpu.memory_space<vmem>>, %arg4: memref<1x128xf32, #tpu.memory_space<vmem>>, %arg5: memref<64x128xf32, #tpu.memory_space<vmem>>) attributes {dimension_semantics = [#tpu.dimension_semantics<parallel>], iteration_bounds = array<i64: 2>, scalar_prefetch = 0 : i64, scratch_operands = 0 : i64, tpu.core_type = #tpu.core_type<tc>, window_params = [{transform_indices = @transform_0, window_bounds = array<i64: 128, 8>}, {pipeline_mode = #tpu.pipeline_mode<synchronous>, transform_indices = @transform_1, window_bounds = array<i64: 16, 128>}, {pipeline_mode = #tpu.pipeline_mode<synchronous>, transform_indices = @transform_2, window_bounds = array<i64: 1, 128>}, {pipeline_mode = #tpu.pipeline_mode<synchronous>, transform_indices = @transform_3, window_bounds = array<i64: 1, 128>}, {transform_indices = @transform_4, window_bounds = array<i64: 64, 128>}]} {
    %c0 = arith.constant 0 : index
    %c0_0 = arith.constant 0 : index
    %0 = vector.load %arg1[%c0, %c0_0] : memref<128x8xf32, #tpu.memory_space<vmem>>, vector<128x8xf32>
    %1 = vector.shape_cast %0 : vector<128x8xf32> to vector<8x2x8x8xf32>
    %cst = arith.constant 0.000000e+00 : f32
    %2 = vector.broadcast %cst : f32 to vector<64x128xf32>
    %cst_1 = arith.constant 0.000000e+00 : f32
    %3 = vector.broadcast %cst_1 : f32 to vector<64x1xf32>
    %cst_2 = arith.constant 0.000000e+00 : f32
    %4 = vector.broadcast %cst_2 : f32 to vector<64x1xf32>
    %5 = vector.extract_strided_slice %1 {offsets = [0, 0, 0, 0], sizes = [8, 1, 8, 8], strides = [1, 1, 1, 1]} : vector<8x2x8x8xf32> to vector<8x1x8x8xf32>
    %6 = vector.shape_cast %5 : vector<8x1x8x8xf32> to vector<8x8x8xf32>
    %7 = vector.shape_cast %6 : vector<8x8x8xf32> to vector<64x8xf32>
    %cst_3 = arith.constant dense<0.000000e+00> : vector<64xf32>
    %8 = vector.multi_reduction <add>, %7, %cst_3 [1] : vector<64x8xf32> to vector<64xf32>
    %9 = vector.shape_cast %8 : vector<64xf32> to vector<64x1xf32>
    %10 = arith.addf %3, %9 : vector<64x1xf32>
    %11 = arith.mulf %7, %7 : vector<64x8xf32>
    %cst_4 = arith.constant dense<0.000000e+00> : vector<64xf32>
    %12 = vector.multi_reduction <add>, %11, %cst_4 [1] : vector<64x8xf32> to vector<64xf32>
    %13 = vector.shape_cast %12 : vector<64xf32> to vector<64x1xf32>
    %14 = arith.addf %4, %13 : vector<64x1xf32>
    %15 = arith.truncf %7 : vector<64x8xf32> to vector<64x8xbf16>
    %c0_5 = arith.constant 0 : index
    %c0_6 = arith.constant 0 : index
    %16 = vector.load %arg2[%c0_5, %c0_6] : memref<16x128xbf16, #tpu.memory_space<vmem>>, vector<8x128xbf16>
    %cst_7 = arith.constant dense<0.000000e+00> : vector<64x128xf32>
    %17 = tpu.matmul %15, %16, %cst_7 {dimension_numbers = #tpu.dot_dimension_numbers<[1], [0], [0], [1], [0, 0, 1, 1], [], []>} : vector<64x8xbf16>, vector<8x128xbf16>, vector<64x128xf32> -> vector<64x128xf32>
    %18 = arith.addf %2, %17 : vector<64x128xf32>
    %19 = vector.extract_strided_slice %1 {offsets = [0, 1, 0, 0], sizes = [8, 1, 8, 8], strides = [1, 1, 1, 1]} : vector<8x2x8x8xf32> to vector<8x1x8x8xf32>
    %20 = vector.shape_cast %19 : vector<8x1x8x8xf32> to vector<8x8x8xf32>
    %21 = vector.shape_cast %20 : vector<8x8x8xf32> to vector<64x8xf32>
    %cst_8 = arith.constant dense<0.000000e+00> : vector<64xf32>
    %22 = vector.multi_reduction <add>, %21, %cst_8 [1] : vector<64x8xf32> to vector<64xf32>
    %23 = vector.shape_cast %22 : vector<64xf32> to vector<64x1xf32>
    %24 = arith.addf %10, %23 : vector<64x1xf32>
    %25 = arith.mulf %21, %21 : vector<64x8xf32>
    %cst_9 = arith.constant dense<0.000000e+00> : vector<64xf32>
    %26 = vector.multi_reduction <add>, %25, %cst_9 [1] : vector<64x8xf32> to vector<64xf32>
    %27 = vector.shape_cast %26 : vector<64xf32> to vector<64x1xf32>
    %28 = arith.addf %14, %27 : vector<64x1xf32>
    %29 = arith.truncf %21 : vector<64x8xf32> to vector<64x8xbf16>
    %c8 = arith.constant 8 : index
    %c0_10 = arith.constant 0 : index
    %30 = vector.load %arg2[%c8, %c0_10] : memref<16x128xbf16, #tpu.memory_space<vmem>>, vector<8x128xbf16>
    %cst_11 = arith.constant dense<0.000000e+00> : vector<64x128xf32>
    %31 = tpu.matmul %29, %30, %cst_11 {dimension_numbers = #tpu.dot_dimension_numbers<[1], [0], [0], [1], [0, 0, 1, 1], [], []>} : vector<64x8xbf16>, vector<8x128xbf16>, vector<64x128xf32> -> vector<64x128xf32>
    %32 = arith.addf %18, %31 : vector<64x128xf32>
    %cst_12 = arith.constant 6.250000e-02 : f32
    %33 = vector.broadcast %cst_12 : f32 to vector<64x1xf32>
    %34 = arith.mulf %24, %33 : vector<64x1xf32>
    %cst_13 = arith.constant 6.250000e-02 : f32
    %35 = vector.broadcast %cst_13 : f32 to vector<64x1xf32>
    %36 = arith.mulf %28, %35 : vector<64x1xf32>
    %37 = arith.mulf %34, %34 : vector<64x1xf32>
    %38 = arith.subf %36, %37 : vector<64x1xf32>
    %cst_14 = arith.constant 9.99999974E-6 : f32
    %39 = vector.broadcast %cst_14 : f32 to vector<64x1xf32>
    %40 = arith.addf %38, %39 : vector<64x1xf32>
    %41 = math.rsqrt %40 : vector<64x1xf32>
    %c0_15 = arith.constant 0 : index
    %c0_16 = arith.constant 0 : index
    %42 = vector.load %arg3[%c0_15, %c0_16] : memref<1x128xf32, #tpu.memory_space<vmem>>, vector<1x128xf32>
    %43 = vector.broadcast %34 : vector<64x1xf32> to vector<64x128xf32>
    %44 = vector.broadcast %42 : vector<1x128xf32> to vector<64x128xf32>
    %45 = arith.mulf %43, %44 : vector<64x128xf32>
    %46 = arith.subf %32, %45 : vector<64x128xf32>
    %47 = vector.broadcast %41 : vector<64x1xf32> to vector<64x128xf32>
    %48 = arith.mulf %46, %47 : vector<64x128xf32>
    %c0_17 = arith.constant 0 : index
    %c0_18 = arith.constant 0 : index
    %49 = vector.load %arg4[%c0_17, %c0_18] : memref<1x128xf32, #tpu.memory_space<vmem>>, vector<1x128xf32>
    %50 = vector.broadcast %49 : vector<1x128xf32> to vector<64x128xf32>
    %51 = arith.addf %48, %50 : vector<64x128xf32>
    %c0_19 = arith.constant 0 : index
    %c0_20 = arith.constant 0 : index
    %52 = vector.load %arg5[%c0_19, %c0_20] : memref<64x128xf32, #tpu.memory_space<vmem>>, vector<64x128xf32>
    tpu.vector_store %arg5[%c0_19, %c0_20], %51 {strides = array<i32>} : memref<64x128xf32, #tpu.memory_space<vmem>>, vector<64x128xf32>,
    return
  }
  func.func @transform_0(%arg0: i32) -> (i32, i32) {
    %c0_i32 = arith.constant 0 : i32
    %c0_i32_0 = arith.constant 0 : i32
    return %arg0, %c0_i32 : i32, i32
  }
  func.func @transform_1(%arg0: i32) -> (i32, i32) {
    %c0_i32 = arith.constant 0 : i32
    %c0_i32_0 = arith.constant 0 : i32
    %c0_i32_1 = arith.constant 0 : i32
    return %c0_i32, %c0_i32_0 : i32, i32
  }
  func.func @transform_2(%arg0: i32) -> (i32, i32) {
    %c0_i32 = arith.constant 0 : i32
    %c0_i32_0 = arith.constant 0 : i32
    %c0_i32_1 = arith.constant 0 : i32
    return %c0_i32, %c0_i32_0 : i32, i32
  }
  func.func @transform_3(%arg0: i32) -> (i32, i32) {
    %c0_i32 = arith.constant 0 : i32
    %c0_i32_0 = arith.constant 0 : i32
    %c0_i32_1 = arith.constant 0 : i32
    return %c0_i32, %c0_i32_0 : i32, i32
  }
  func.func @transform_4(%arg0: i32) -> (i32, i32) {
    %c0_i32 = arith.constant 0 : i32
    %c0_i32_0 = arith.constant 0 : i32
    return %arg0, %c0_i32 : i32, i32
  }
}

</mosaic_0001>

<llo_original>
// kernel: _patch_merge_impl.1
$region0: #{_patch_merge_impl.1}
  #allocation0 [shape = 'u32[]', space=smem, size = 0x4, offset = 0x4, fixed_abs, tag = 'smem constant byte address 0x4 - core index']
  #allocation1 [shape = 'u32[144,128]{1,0:T(1,128)}', space=vmem, size = 0x12000, scoped, tag = 'internal scratch']
  %s0 = inlined_call_operand.vmem [shape: f32[256,8], index: 0, kind: input, shape index: {}]
  %s1 = inlined_call_operand.vmem [shape: bf16[16,128], index: 1, kind: input, shape index: {}]
  %s2 = inlined_call_operand.vmem [shape: f32[1,128], index: 2, kind: input, shape index: {}]
  %s3 = inlined_call_operand.vmem [shape: f32[1,128], index: 3, kind: input, shape index: {}]
  %s4 = inlined_call_operand.hbm [shape: f32[128,128], index: 4, kind: output, shape index: {}]
  %s5 = sld [smem:[#allocation0]]
  $region49: #{_patch_merge_impl.1} parent=0
    _
  %s7 = ssub.s32 1, %s5
  %s8 = scalar_select 0, %s7, %s5
  $region1: #{_patch_merge_impl.1} parent=0
    #allocation2 [shape = 'u8[65536]{0}', space=vmem, size = 0x10000, scoped, tag = 'output window, operand 0']
    #allocation3 [shape = 's32[2]{0}', space=sflag, size = 0x8, scoped, tag = 'scoped memory for _patch_merge_impl.1']
    %9 = vsyncpa [#allocation3], 0
    %s10 = scalar_lea.sflag [#allocation3], 1
    %11 = vsyncpa %s10, 0
    loop: start=0, step=1, limit=4
    $region2: #{_patch_merge_impl.1} parent=1 // loop_pre_header
      _
    $region3: #{_patch_merge_impl.1} parent=1 // loop_header
      %s13 = sphi 0, %s17
      %p14 = scmp.ge.s32.totalorder %s13, 4
      %s23 = sphi 0, %s25
      %s26 = sphi 0, %s23
      %s27 = sphi 0, %s26
      %s43 = sphi 0, %s27
      %s47 = sphi 0, %s47
      %s49 = sphi 0, %s47
      %s50 = sphi 0, %s49
      %s64 = sphi 0, %s50
      %s68 = sphi 0, %s68
      %s70 = sphi 0, %s68
      %s71 = sphi 0, %s70
      %s85 = sphi 0, %s71
      %s89 = sphi 0, %s89
      %s91 = sphi 0, %s89
      %s92 = sphi 0, %s91
      %s106 = sphi 0, %s92
      %s112 = sphi 0, %s114
      %s115 = sphi 0, %s112
      %s116 = sphi 0, %s115
      %s132 = sphi 0, %s116
    $region4: #{_patch_merge_impl.1} parent=1 // loop_header_branch
      %16 = sbr.rel (%p14) target = $region8
    $region5: #{_patch_merge_impl.1} parent=1 // loop_body
      %s18 = ssub.s32 %s13, 1
      %s19 = ssub.s32 %s13, 2
      %s20 = sadd.s32 %s13, 1
      %s21 = ssub.s32 %s13, %s20
      %p22 = scmp.eq.s32.totalorder %s21, 0
      %s24 = sadd.s32 %s23, 1
      %s25 = scalar_select %p22, %s23, %s24
      %p28 = pneg %p22
      %p29 = scmp.eq.s32.totalorder %s13, 1
      %p30 = por %p28, %p29
      %p31 = scmp.ne.s32.totalorder %s23, %s26
      %p32 = scmp.eq.s32.totalorder %s13, 0
      %p33 = por %p31, %p32
      %p34 = scmp.ne.s32.totalorder %s23, %s26
      %p35 = scmp.eq.s32.totalorder %s18, 1
      %p36 = por %p34, %p35
      %p37 = scmp.ne.s32.totalorder %s26, %s27
      %p38 = scmp.eq.s32.totalorder %s18, 0
      %p39 = por %p37, %p38
      %p40 = scmp.ne.s32.totalorder %s26, %s27
      %p41 = scmp.eq.s32.totalorder %s19, 1
      %p42 = por %p40, %p41
      %p44 = scmp.ne.s32.totalorder %s27, %s43
      %p45 = scmp.eq.s32.totalorder %s19, 0
      %p46 = por %p44, %p45
      %s48 = sadd.s32 %s47, 1
      %p51 = scmp.eq.s32.totalorder %s13, 1
      %p52 = scmp.ne.s32.totalorder %s47, %s49
      %p53 = scmp.eq.s32.totalorder %s13, 0
      %p54 = por %p52, %p53
      %p55 = scmp.ne.s32.totalorder %s47, %s49
      %p56 = scmp.eq.s32.totalorder %s18, 1
      %p57 = por %p55, %p56
      %p58 = scmp.ne.s32.totalorder %s49, %s50
      %p59 = scmp.eq.s32.totalorder %s18, 0
      %p60 = por %p58, %p59
      %p61 = scmp.ne.s32.totalorder %s49, %s50
      %p62 = scmp.eq.s32.totalorder %s19, 1
      %p63 = por %p61, %p62
      %p65 = scmp.ne.s32.totalorder %s50, %s64
      %p66 = scmp.eq.s32.totalorder %s19, 0
      %p67 = por %p65, %p66
      %s69 = sadd.s32 %s68, 1
      %p72 = scmp.eq.s32.totalorder %s13, 1
      %p73 = scmp.ne.s32.totalorder %s68, %s70
      %p74 = scmp.eq.s32.totalorder %s13, 0
      %p75 = por %p73, %p74
      %p76 = scmp.ne.s32.totalorder %s68, %s70
      %p77 = scmp.eq.s32.totalorder %s18, 1
      %p78 = por %p76, %p77
      %p79 = scmp.ne.s32.totalorder %s70, %s71
      %p80 = scmp.eq.s32.totalorder %s18, 0
      %p81 = por %p79, %p80
      %p82 = scmp.ne.s32.totalorder %s70, %s71
      %p83 = scmp.eq.s32.totalorder %s19, 1
      %p84 = por %p82, %p83
      %p86 = scmp.ne.s32.totalorder %s71, %s85
      %p87 = scmp.eq.s32.totalorder %s19, 0
      %p88 = por %p86, %p87
      %s90 = sadd.s32 %s89, 1
      %p93 = scmp.eq.s32.totalorder %s13, 1
      %p94 = scmp.ne.s32.totalorder %s89, %s91
      %p95 = scmp.eq.s32.totalorder %s13, 0
      %p96 = por %p94, %p95
      %p97 = scmp.ne.s32.totalorder %s89, %s91
      %p98 = scmp.eq.s32.totalorder %s18, 1
      %p99 = por %p97, %p98
      %p100 = scmp.ne.s32.totalorder %s91, %s92
      %p101 = scmp.eq.s32.totalorder %s18, 0
      %p102 = por %p100, %p101
      %p103 = scmp.ne.s32.totalorder %s91, %s92
      %p104 = scmp.eq.s32.totalorder %s19, 1
      %p105 = por %p103, %p104
      %p107 = scmp.ne.s32.totalorder %s92, %s106
      %p108 = scmp.eq.s32.totalorder %s19, 0
      %p109 = por %p107, %p108
      %s110 = ssub.s32 %s13, %s20
      %p111 = scmp.eq.s32.totalorder %s110, 0
      %s113 = sadd.s32 %s112, 1
      %s114 = scalar_select %p111, %s112, %s113
      %p117 = pneg %p111
      %p118 = scmp.eq.s32.totalorder %s13, 1
      %p119 = por %p117, %p118
      %p120 = scmp.ne.s32.totalorder %s112, %s115
      %p121 = scmp.eq.s32.totalorder %s13, 0
      %p122 = por %p120, %p121
      %p123 = scmp.ne.s32.totalorder %s112, %s115
      %p124 = scmp.eq.s32.totalorder %s18, 1
      %p125 = por %p123, %p124
      %p126 = scmp.ne.s32.totalorder %s115, %s116
      %p127 = scmp.eq.s32.totalorder %s18, 0
      %p128 = por %p126, %p127
      %p129 = scmp.ne.s32.totalorder %s115, %s116
      %p130 = scmp.eq.s32.totalorder %s19, 1
      %p131 = por %p129, %p130
      %p133 = scmp.ne.s32.totalorder %s116, %s132
      %p134 = scmp.eq.s32.totalorder %s19, 0
      %p135 = por %p133, %p134
      %p136 = scmp.le.s32.totalorder 1, %s13
      %p137 = scmp.lt.s32.totalorder %s13, 3
      %p138 = pnand %p136, %p137
      %p139 = pneg %p138
      // Predicated region
      $region9: #{_patch_merge_impl.1} parent=5 // pred_check
        _
      $region10: #{_patch_merge_impl.1} parent=5 // pred_check_branch
        %141 = sbr.rel (%p138) target = $region12
      $region11: #{_patch_merge_impl.1} parent=5 // pred_region
        %s142 = ssub.s32 %s13, 1
        // Predicated region
        $region13: #{_patch_merge_impl.1} parent=11 // pred_check
          %p143 = pneg %p60
        $region14: #{_patch_merge_impl.1} parent=11 // pred_check_branch
          %145 = sbr.rel (%p143) target = $region16
        $region15: #{_patch_merge_impl.1} parent=11 // pred_region
          _
        $region16: #{_patch_merge_impl.1} parent=11 // pred_fallthru
          _
        // Predicated region
        $region17: #{_patch_merge_impl.1} parent=11 // pred_check
          %p146 = pneg %p81
        $region18: #{_patch_merge_impl.1} parent=11 // pred_check_branch
          %148 = sbr.rel (%p146) target = $region20
        $region19: #{_patch_merge_impl.1} parent=11 // pred_region
          _
        $region20: #{_patch_merge_impl.1} parent=11 // pred_fallthru
          _
        // Predicated region
        $region21: #{_patch_merge_impl.1} parent=11 // pred_check
          %p149 = pneg %p102
        $region22: #{_patch_merge_impl.1} parent=11 // pred_check_branch
          %151 = sbr.rel (%p149) target = $region24
        $region23: #{_patch_merge_impl.1} parent=11 // pred_region
          _
        $region24: #{_patch_merge_impl.1} parent=11 // pred_fallthru
          _
      $region12: #{_patch_merge_impl.1} parent=5 // pred_fallthru
        _
      %p152 = scmp.lt.s32.totalorder %s13, 2
      // Predicated region
      $region25: #{_patch_merge_impl.1} parent=5 // pred_check
        %p153 = pneg %p152
      $region26: #{_patch_merge_impl.1} parent=5 // pred_check_branch
        %155 = sbr.rel (%p153) target = $region28
      $region27: #{_patch_merge_impl.1} parent=5 // pred_region
        // Predicated region
        $region29: #{_patch_merge_impl.1} parent=27 // pred_check
          %p156 = pneg %p33
        $region30: #{_patch_merge_impl.1} parent=27 // pred_check_branch
          %158 = sbr.rel (%p156) target = $region32
        $region31: #{_patch_merge_impl.1} parent=27 // pred_region
          %s159 = smul.u32 16, %s13
          %p160 = scmp.lt.s32.totalorder %s159, 31
          %s161 = scalar_select %p160, %s159, 31
          %s162 = smul.addr %s161, 8
          %s163 = scalar_lea.vmem %s0, %s162
          %s164 = smul.u32 16, %s13
        $region32: #{_patch_merge_impl.1} parent=27 // pred_fallthru
          _
      $region28: #{_patch_merge_impl.1} parent=5 // pred_fallthru
        _
      %p165 = scmp.le.s32.totalorder 1, %s13
      %p166 = scmp.lt.s32.totalorder %s13, 3
      %p167 = pnand %p165, %p166
      %p168 = pneg %p167
      // Predicated region
      $region33: #{_patch_merge_impl.1} parent=5 // pred_check
        _
      $region34: #{_patch_merge_impl.1} parent=5 // pred_check_branch
        %170 = sbr.rel (%p167) target = $region36
      $region35: #{_patch_merge_impl.1} parent=5 // pred_region
        %s171 = ssub.s32 %s13, 1
        %s172 = smul.u32 16, %s18
        %p173 = scmp.lt.s32.totalorder %s172, 31
        %s174 = scalar_select %p173, %s172, 31
        %s175 = smul.addr %s174, 8
        %s176 = scalar_lea.vmem %s0, %s175
        %p177 = pneg %p39
        %p178 = pneg %p36
        %p179 = pneg %p60
        %p180 = pneg %p57
        %p181 = pneg %p81
        %p182 = pneg %p78
        %p183 = pneg %p102
        %p184 = pneg %p99
        %p185 = pneg %p128
        %p186 = pneg %p125
        %s187 = sand.u32 %s115, 1
        %s188 = scalar_lea.sflag [#allocation3], %s187
        %s189 = sand.u32 %s115, 1
        %s190 = smul.addr %s189, 64
        %s191 = scalar_lea.vmem [#allocation2], %s190
        %s192 = smul.u32 16, %s18
        %p193 = scmp.lt.s32.totalorder %s192, 31
        %s194 = scalar_select %p193, %s192, 31
        %s195 = smul.addr %s194, 8
        %s196 = scalar_lea.vmem %s0, %s195
        %s197 = smul.u32 16, %s18
        %s198 = smul.u32 8, %s18
        %v200 = vld [vmem:[%s196] sm:$0xff]
        %v201 = vld [vmem:[%s196 + $0x8] sm:$0xff]
        %v202 = vld [vmem:[%s196 + $0x10] sm:$0xff]
        %v203 = vld [vmem:[%s196 + $0x18] sm:$0xff]
        %v204 = vld [vmem:[%s196 + $0x20] sm:$0xff]
        %v205 = vld [vmem:[%s196 + $0x28] sm:$0xff]
        %v206 = vld [vmem:[%s196 + $0x30] sm:$0xff]
        %v207 = vld [vmem:[%s196 + $0x38] sm:$0xff]
        %v208 = vld [vmem:[%s196 + $0x40] sm:$0xff]
        %v209 = vld [vmem:[%s196 + $0x48] sm:$0xff]
        %v210 = vld [vmem:[%s196 + $0x50] sm:$0xff]
        %v211 = vld [vmem:[%s196 + $0x58] sm:$0xff]
        %v212 = vld [vmem:[%s196 + $0x60] sm:$0xff]
        %v213 = vld [vmem:[%s196 + $0x68] sm:$0xff]
        %v214 = vld [vmem:[%s196 + $0x70] sm:$0xff]
        %v215 = vld [vmem:[%s196 + $0x78] sm:$0xff]
        %vm216 = vcmask 64512
        %v217 = vsel %vm216, %v200, 0.0
        %218 = vadd.xlane.f32.xlu0 %v217
        %v219 = vpop.xlane.xlu0 %218
        %v220 = vsel %vm216, %v202, 0.0
        %221 = vadd.xlane.f32.xlu0 %v220
        %v222 = vpop.xlane.xlu0 %221
        %v223 = vsel %vm216, %v204, 0.0
        %224 = vadd.xlane.f32.xlu0 %v223
        %v225 = vpop.xlane.xlu0 %224
        %v226 = vsel %vm216, %v206, 0.0
        %227 = vadd.xlane.f32.xlu0 %v226
        %v228 = vpop.xlane.xlu0 %227
        %v229 = vsel %vm216, %v208, 0.0
        %230 = vadd.xlane.f32.xlu0 %v229
        %v231 = vpop.xlane.xlu0 %230
        %v232 = vsel %vm216, %v210, 0.0
        %233 = vadd.xlane.f32.xlu0 %v232
        %v234 = vpop.xlane.xlu0 %233
        %v235 = vsel %vm216, %v212, 0.0
        %236 = vadd.xlane.f32.xlu0 %v235
        %v237 = vpop.xlane.xlu0 %236
        %v238 = vsel %vm216, %v214, 0.0
        %239 = vadd.xlane.f32.xlu0 %v238
        %v240 = vpop.xlane.xlu0 %239
        %v241 = vadd.f32 %v219, 0.0
        %v242 = vadd.f32 %v222, 0.0
        %v243 = vadd.f32 %v225, 0.0
        %v244 = vadd.f32 %v228, 0.0
        %v245 = vadd.f32 %v231, 0.0
        %v246 = vadd.f32 %v234, 0.0
        %v247 = vadd.f32 %v237, 0.0
        %v248 = vadd.f32 %v240, 0.0
        %v249 = vmul.f32 %v200, %v200
        %v250 = vmul.f32 %v202, %v202
        %v251 = vmul.f32 %v204, %v204
        %v252 = vmul.f32 %v206, %v206
        %v253 = vmul.f32 %v208, %v208
        %v254 = vmul.f32 %v210, %v210
        %v255 = vmul.f32 %v212, %v212
        %v256 = vmul.f32 %v214, %v214
        %v257 = vsel %vm216, %v249, 0.0
        %258 = vadd.xlane.f32.xlu0 %v257
        %v259 = vpop.xlane.xlu0 %258
        %v260 = vsel %vm216, %v250, 0.0
        %261 = vadd.xlane.f32.xlu0 %v260
        %v262 = vpop.xlane.xlu0 %261
        %v263 = vsel %vm216, %v251, 0.0
        %264 = vadd.xlane.f32.xlu0 %v263
        %v265 = vpop.xlane.xlu0 %264
        %v266 = vsel %vm216, %v252, 0.0
        %267 = vadd.xlane.f32.xlu0 %v266
        %v268 = vpop.xlane.xlu0 %267
        %v269 = vsel %vm216, %v253, 0.0
        %270 = vadd.xlane.f32.xlu0 %v269
        %v271 = vpop.xlane.xlu0 %270
        %v272 = vsel %vm216, %v254, 0.0
        %273 = vadd.xlane.f32.xlu0 %v272
        %v274 = vpop.xlane.xlu0 %273
        %v275 = vsel %vm216, %v255, 0.0
        %276 = vadd.xlane.f32.xlu0 %v275
        %v277 = vpop.xlane.xlu0 %276
        %v278 = vsel %vm216, %v256, 0.0
        %279 = vadd.xlane.f32.xlu0 %v278
        %v280 = vpop.xlane.xlu0 %279
        %v281 = vadd.f32 %v259, 0.0
        %v282 = vadd.f32 %v262, 0.0
        %v283 = vadd.f32 %v265, 0.0
        %v284 = vadd.f32 %v268, 0.0
        %v285 = vadd.f32 %v271, 0.0
        %v286 = vadd.f32 %v274, 0.0
        %v287 = vadd.f32 %v277, 0.0
        %v288 = vadd.f32 %v280, 0.0
        %v289 = vpack.c.bf16 %v202, %v200
        %v290 = vpack.c.bf16 %v206, %v204
        %v291 = vpack.c.bf16 %v210, %v208
        %v292 = vpack.c.bf16 %v214, %v212
        %v293 = vld [vmem:[%s1] sm:$0xf]
        %v294 = vsel %vm216, %v201, 0.0
        %295 = vadd.xlane.f32.xlu0 %v294
        %v296 = vpop.xlane.xlu0 %295
        %v297 = vsel %vm216, %v203, 0.0
        %298 = vadd.xlane.f32.xlu0 %v297
        %v299 = vpop.xlane.xlu0 %298
        %v300 = vsel %vm216, %v205, 0.0
        %301 = vadd.xlane.f32.xlu0 %v300
        %v302 = vpop.xlane.xlu0 %301
        %v303 = vsel %vm216, %v207, 0.0
        %304 = vadd.xlane.f32.xlu0 %v303
        %v305 = vpop.xlane.xlu0 %304
        %v306 = vsel %vm216, %v209, 0.0
        %307 = vadd.xlane.f32.xlu0 %v306
        %v308 = vpop.xlane.xlu0 %307
        %v309 = vsel %vm216, %v211, 0.0
        %310 = vadd.xlane.f32.xlu0 %v309
        %v311 = vpop.xlane.xlu0 %310
        %v312 = vsel %vm216, %v213, 0.0
        %313 = vadd.xlane.f32.xlu0 %v312
        %v314 = vpop.xlane.xlu0 %313
        %v315 = vsel %vm216, %v215, 0.0
        %316 = vadd.xlane.f32.xlu0 %v315
        %v317 = vpop.xlane.xlu0 %316
        %v318 = vadd.f32 %v241, %v296
        %v319 = vadd.f32 %v242, %v299
        %v320 = vadd.f32 %v243, %v302
        %v321 = vadd.f32 %v244, %v305
        %v322 = vadd.f32 %v245, %v308
        %v323 = vadd.f32 %v246, %v311
        %v324 = vadd.f32 %v247, %v314
        %v325 = vadd.f32 %v248, %v317
        %v326 = vmul.f32 %v201, %v201
        %v327 = vmul.f32 %v203, %v203
        %v328 = vmul.f32 %v205, %v205
        %v329 = vmul.f32 %v207, %v207
        %v330 = vmul.f32 %v209, %v209
        %v331 = vmul.f32 %v211, %v211
        %v332 = vmul.f32 %v213, %v213
        %v333 = vmul.f32 %v215, %v215
        %v334 = vsel %vm216, %v326, 0.0
        %335 = vadd.xlane.f32.xlu0 %v334
        %v336 = vpop.xlane.xlu0 %335
        %v337 = vsel %vm216, %v327, 0.0
        %338 = vadd.xlane.f32.xlu0 %v337
        %v339 = vpop.xlane.xlu0 %338
        %v340 = vsel %vm216, %v328, 0.0
        %341 = vadd.xlane.f32.xlu0 %v340
        %v342 = vpop.xlane.xlu0 %341
        %v343 = vsel %vm216, %v329, 0.0
        %344 = vadd.xlane.f32.xlu0 %v343
        %v345 = vpop.xlane.xlu0 %344
        %v346 = vsel %vm216, %v330, 0.0
        %347 = vadd.xlane.f32.xlu0 %v346
        %v348 = vpop.xlane.xlu0 %347
        %v349 = vsel %vm216, %v331, 0.0
        %350 = vadd.xlane.f32.xlu0 %v349
        %v351 = vpop.xlane.xlu0 %350
        %v352 = vsel %vm216, %v332, 0.0
        %353 = vadd.xlane.f32.xlu0 %v352
        %v354 = vpop.xlane.xlu0 %353
        %v355 = vsel %vm216, %v333, 0.0
        %356 = vadd.xlane.f32.xlu0 %v355
        %v357 = vpop.xlane.xlu0 %356
        %v358 = vadd.f32 %v281, %v336
        %v359 = vadd.f32 %v282, %v339
        %v360 = vadd.f32 %v283, %v342
        %v361 = vadd.f32 %v284, %v345
        %v362 = vadd.f32 %v285, %v348
        %v363 = vadd.f32 %v286, %v351
        %v364 = vadd.f32 %v287, %v354
        %v365 = vadd.f32 %v288, %v357
        %v366 = vpack.c.bf16 %v203, %v201
        %v367 = vpack.c.bf16 %v207, %v205
        %v368 = vpack.c.bf16 %v211, %v209
        %v369 = vpack.c.bf16 %v215, %v213
        %v370 = vld [vmem:[%s1 + $0x4] sm:$0xf]
        %v372 = vsel %vm216, %v366, 0
        %v375 = vsel %vm216, %v367, 0
        %v378 = vsel %vm216, %v368, 0
        %v381 = vsel %vm216, %v369, 0
        %vm383 = vcmask 1043456
        %v385 = vsel %vm383, %v370, 0
        %387 = vmatprep.subr.bf16.mxu0 0
        %388 = vmatpush1.bf16.msra.mxu0 0
        %389 = vmatprep.subr.bf16.mxu0 0
        %390 = vmatpush1.bf16.msra.mxu0 0
        %391 = vmatprep.subr.bf16.mxu0 0
        %392 = vmatpush1.bf16.msra.mxu0 0
        %393 = vmatprep.subr.bf16.mxu0 0
        %394 = vmatpush1.bf16.msra.mxu0 0
        %395 = vmatprep.subr.bf16.mxu0 0
        %396 = vmatpush1.bf16.msra.mxu0 0
        %397 = vmatprep.subr.bf16.mxu0 0
        %398 = vmatpush1.bf16.msra.mxu0 0
        %399 = vmatprep.subr.bf16.mxu0 0
        %400 = vmatpush1.bf16.msra.mxu0 0
        %401 = vmatprep.subr.bf16.mxu0 0
        %402 = vmatpush1.bf16.msra.mxu0 %v385
        %403 = vmatprep.subr.bf16.mxu0 0
        %404 = vmatpush2.bf16.msra.mxu0 0
        %405 = vmatprep.subr.bf16.mxu0 0
        %406 = vmatpush2.bf16.msra.mxu0 0
        %407 = vmatprep.subr.bf16.mxu0 0
        %408 = vmatpush2.bf16.msra.mxu0 0
        %409 = vmatprep.subr.bf16.mxu0 0
        %410 = vmatpush2.bf16.msra.mxu0 0
        %411 = vmatprep.subr.bf16.mxu0 0
        %412 = vmatpush2.bf16.msra.mxu0 0
        %413 = vmatprep.subr.bf16.mxu0 0
        %414 = vmatpush2.bf16.msra.mxu0 0
        %415 = vmatprep.subr.bf16.mxu0 0
        %416 = vmatpush2.bf16.msra.mxu0 0
        %417 = vmatprep.subr.bf16.mxu0 0
        %418 = vmatpush2.bf16.msra.mxu0 0
        %419 = vmatprep.mubr.bf16.mxu0 0
        %420 = vmatmul.mubr.bf16.gmra.mxu0 %v372
        %v421 = vpop.f32.mrf.mxu0
        %v422 = vadd.f32 0.0, %v421
        %v423 = vpop.f32.mrf.mxu0
        %v424 = vpop.f32.mrf.mxu0
        %v425 = vadd.f32 0.0, %v424
        %v426 = vpop.f32.mrf.mxu0
        %427 = vmatprep.mubr.bf16.mxu0 0
        %428 = vmatmul.mubr.bf16.gmra.mxu0 %v375
        %v429 = vpop.f32.mrf.mxu0
        %v430 = vadd.f32 0.0, %v429
        %v431 = vpop.f32.mrf.mxu0
        %v432 = vpop.f32.mrf.mxu0
        %v433 = vadd.f32 0.0, %v432
        %v434 = vpop.f32.mrf.mxu0
        %435 = vmatprep.mubr.bf16.mxu0 0
        %436 = vmatmul.mubr.bf16.gmra.mxu0 %v378
        %v437 = vpop.f32.mrf.mxu0
        %v438 = vadd.f32 0.0, %v437
        %v439 = vpop.f32.mrf.mxu0
        %v440 = vpop.f32.mrf.mxu0
        %v441 = vadd.f32 0.0, %v440
        %v442 = vpop.f32.mrf.mxu0
        %443 = vmatprep.mubr.bf16.mxu0 0
        %444 = vmatmul.mubr.bf16.gmra.mxu0 %v381
        %v445 = vpop.f32.mrf.mxu0
        %v446 = vadd.f32 0.0, %v445
        %v447 = vpop.f32.mrf.mxu0
        %v448 = vpop.f32.mrf.mxu0
        %v449 = vadd.f32 0.0, %v448
        %v450 = vpop.f32.mrf.mxu0
        %451 = vdwg.mxu0
        %v453 = vsel %vm216, %v289, 0
        %v456 = vsel %vm216, %v290, 0
        %v459 = vsel %vm216, %v291, 0
        %v462 = vsel %vm216, %v292, 0
        %v465 = vsel %vm383, %v293, 0
        %467 = vmatprep.subr.bf16.mxu0 0
        %468 = vmatpush1.bf16.msra.mxu0 0
        %469 = vmatprep.subr.bf16.mxu0 0
        %470 = vmatpush1.bf16.msra.mxu0 0
        %471 = vmatprep.subr.bf16.mxu0 0
        %472 = vmatpush1.bf16.msra.mxu0 0
        %473 = vmatprep.subr.bf16.mxu0 0
        %474 = vmatpush1.bf16.msra.mxu0 0
        %475 = vmatprep.subr.bf16.mxu0 0
        %476 = vmatpush1.bf16.msra.mxu0 0
        %477 = vmatprep.subr.bf16.mxu0 0
        %478 = vmatpush1.bf16.msra.mxu0 0
        %479 = vmatprep.subr.bf16.mxu0 0
        %480 = vmatpush1.bf16.msra.mxu0 0
        %481 = vmatprep.subr.bf16.mxu0 0
        %482 = vmatpush1.bf16.msra.mxu0 %v465
        %483 = vmatprep.subr.bf16.mxu0 0
        %484 = vmatpush2.bf16.msra.mxu0 0
        %485 = vmatprep.subr.bf16.mxu0 0
        %486 = vmatpush2.bf16.msra.mxu0 0
        %487 = vmatprep.subr.bf16.mxu0 0
        %488 = vmatpush2.bf16.msra.mxu0 0
        %489 = vmatprep.subr.bf16.mxu0 0
        %490 = vmatpush2.bf16.msra.mxu0 0
        %491 = vmatprep.subr.bf16.mxu0 0
        %492 = vmatpush2.bf16.msra.mxu0 0
        %493 = vmatprep.subr.bf16.mxu0 0
        %494 = vmatpush2.bf16.msra.mxu0 0
        %495 = vmatprep.subr.bf16.mxu0 0
        %496 = vmatpush2.bf16.msra.mxu0 0
        %497 = vmatprep.subr.bf16.mxu0 0
        %498 = vmatpush2.bf16.msra.mxu0 0
        %499 = vmatprep.mubr.bf16.mxu0 0
        %500 = vmatmul.mubr.bf16.gmra.mxu0 %v453
        %v501 = vpop.f32.mrf.mxu0
        %v502 = vadd.f32 %v422, %v501
        %v503 = vpop.f32.mrf.mxu0
        %v504 = vpop.f32.mrf.mxu0
        %v505 = vadd.f32 %v425, %v504
        %v506 = vpop.f32.mrf.mxu0
        %507 = vmatprep.mubr.bf16.mxu0 0
        %508 = vmatmul.mubr.bf16.gmra.mxu0 %v456
        %v509 = vpop.f32.mrf.mxu0
        %v510 = vadd.f32 %v430, %v509
        %v511 = vpop.f32.mrf.mxu0
        %v512 = vpop.f32.mrf.mxu0
        %v513 = vadd.f32 %v433, %v512
        %v514 = vpop.f32.mrf.mxu0
        %515 = vmatprep.mubr.bf16.mxu0 0
        %516 = vmatmul.mubr.bf16.gmra.mxu0 %v459
        %v517 = vpop.f32.mrf.mxu0
        %v518 = vadd.f32 %v438, %v517
        %v519 = vpop.f32.mrf.mxu0
        %v520 = vpop.f32.mrf.mxu0
        %v521 = vadd.f32 %v441, %v520
        %v522 = vpop.f32.mrf.mxu0
        %523 = vmatprep.mubr.bf16.mxu0 0
        %524 = vmatmul.mubr.bf16.gmra.mxu0 %v462
        %v525 = vpop.f32.mrf.mxu0
        %v526 = vadd.f32 %v446, %v525
        %v527 = vpop.f32.mrf.mxu0
        %v528 = vpop.f32.mrf.mxu0
        %v529 = vadd.f32 %v449, %v528
        %v530 = vpop.f32.mrf.mxu0
        %531 = vdwg.mxu0
        %v532 = vmul.f32 %v318, 0.0625
        %v533 = vmul.f32 %v319, 0.0625
        %v534 = vmul.f32 %v320, 0.0625
        %v535 = vmul.f32 %v321, 0.0625
        %v536 = vmul.f32 %v322, 0.0625
        %v537 = vmul.f32 %v323, 0.0625
        %v538 = vmul.f32 %v324, 0.0625
        %v539 = vmul.f32 %v325, 0.0625
        %v540 = vmul.f32 %v358, 0.0625
        %v541 = vmul.f32 %v359, 0.0625
        %v542 = vmul.f32 %v360, 0.0625
        %v543 = vmul.f32 %v361, 0.0625
        %v544 = vmul.f32 %v362, 0.0625
        %v545 = vmul.f32 %v363, 0.0625
        %v546 = vmul.f32 %v364, 0.0625
        %v547 = vmul.f32 %v365, 0.0625
        %v548 = vmul.f32 %v532, %v532
        %v549 = vmul.f32 %v533, %v533
        %v550 = vmul.f32 %v534, %v534
        %v551 = vmul.f32 %v535, %v535
        %v552 = vmul.f32 %v536, %v536
        %v553 = vmul.f32 %v537, %v537
        %v554 = vmul.f32 %v538, %v538
        %v555 = vmul.f32 %v539, %v539
        %v556 = vsub.f32 %v540, %v548
        %v557 = vsub.f32 %v541, %v549
        %v558 = vsub.f32 %v542, %v550
        %v559 = vsub.f32 %v543, %v551
        %v560 = vsub.f32 %v544, %v552
        %v561 = vsub.f32 %v545, %v553
        %v562 = vsub.f32 %v546, %v554
        %v563 = vsub.f32 %v547, %v555
        %v564 = vadd.f32 %v556, 1e-05
        %v565 = vadd.f32 %v557, 1e-05
        %v566 = vadd.f32 %v558, 1e-05
        %v567 = vadd.f32 %v559, 1e-05
        %v568 = vadd.f32 %v560, 1e-05
        %v569 = vadd.f32 %v561, 1e-05
        %v570 = vadd.f32 %v562, 1e-05
        %v571 = vadd.f32 %v563, 1e-05
        %v572 = vrsqrt.pop %v564
        %v573 = vrsqrt.pop %v565
        %v574 = vrsqrt.pop %v566
        %v575 = vrsqrt.pop %v567
        %v576 = vrsqrt.pop %v568
        %v577 = vrsqrt.pop %v569
        %v578 = vrsqrt.pop %v570
        %v579 = vrsqrt.pop %v571
        %v580 = vld [vmem:[%s2] sm:$0x1]
        %v582 = vlaneseq
        %v583 = vshrl.u32 %v582, 7
        %v584 = vsub.s32 0, %v583
        %v585 = vrot.slane %v580, %v584
        %v587 = vmul.f32 %v532, %v585
        %v588 = vmul.f32 %v533, %v585
        %v589 = vmul.f32 %v534, %v585
        %v590 = vmul.f32 %v535, %v585
        %v591 = vmul.f32 %v536, %v585
        %v592 = vmul.f32 %v537, %v585
        %v593 = vmul.f32 %v538, %v585
        %v594 = vmul.f32 %v539, %v585
        %v595 = vsub.f32 %v502, %v587
        %v596 = vsub.f32 %v505, %v588
        %v597 = vsub.f32 %v510, %v589
        %v598 = vsub.f32 %v513, %v590
        %v599 = vsub.f32 %v518, %v591
        %v600 = vsub.f32 %v521, %v592
        %v601 = vsub.f32 %v526, %v593
        %v602 = vsub.f32 %v529, %v594
        %v603 = vmul.f32 %v595, %v572
        %v604 = vmul.f32 %v596, %v573
        %v605 = vmul.f32 %v597, %v574
        %v606 = vmul.f32 %v598, %v575
        %v607 = vmul.f32 %v599, %v576
        %v608 = vmul.f32 %v600, %v577
        %v609 = vmul.f32 %v601, %v578
        %v610 = vmul.f32 %v602, %v579
        %v611 = vld [vmem:[%s3] sm:$0x1]
        %v613 = vlaneseq
        %v614 = vshrl.u32 %v613, 7
        %v615 = vsub.s32 0, %v614
        %v616 = vrot.slane %v611, %v615
        %v618 = vadd.f32 %v603, %v616
        %v619 = vadd.f32 %v604, %v616
        %v620 = vadd.f32 %v605, %v616
        %v621 = vadd.f32 %v606, %v616
        %v622 = vadd.f32 %v607, %v616
        %v623 = vadd.f32 %v608, %v616
        %v624 = vadd.f32 %v609, %v616
        %v625 = vadd.f32 %v610, %v616
        %626 = vst [vmem:[%s191] sm:$0xff] %v618
        %627 = vst [vmem:[%s191 + $0x8] sm:$0xff] %v619
        %628 = vst [vmem:[%s191 + $0x10] sm:$0xff] %v620
        %629 = vst [vmem:[%s191 + $0x18] sm:$0xff] %v621
        %630 = vst [vmem:[%s191 + $0x20] sm:$0xff] %v622
        %631 = vst [vmem:[%s191 + $0x28] sm:$0xff] %v623
        %632 = vst [vmem:[%s191 + $0x30] sm:$0xff] %v624
        %633 = vst [vmem:[%s191 + $0x38] sm:$0xff] %v625
        %s634 = sand.u32 %s115, 1
        %s635 = scalar_lea.sflag [#allocation3], %s634
        %s636 = sand.u32 %s115, 1
        %s637 = smul.addr %s636, 64
        %s638 = scalar_lea.vmem [#allocation2], %s637
        // Predicated region
        $region37: #{_patch_merge_impl.1} parent=35 // pred_check
          %p639 = pneg %p125
        $region38: #{_patch_merge_impl.1} parent=35 // pred_check_branch
          %641 = sbr.rel (%p639) target = $region40
        $region39: #{_patch_merge_impl.1} parent=35 // pred_region
          %s642 = smul.u32 8, %s18
          %s644 = ssub.s32 1024, 1024
          %645 = vsyncadd %s635, %s644
          %s646 = smul.addr %s642, 128
          %s647 = scalar_lea.hbm %s4, %s646
          %s648 = sshll.u32 %s638, 4
          %s649 = int_to_ptr.vmem [resolvable:$true] %s648
          %654 = dma.vmem_to_hbm [thread:$0]  %s649, 1024, %s647, %s635, 128, 128, 8
        $region40: #{_patch_merge_impl.1} parent=35 // pred_fallthru
          _
      $region36: #{_patch_merge_impl.1} parent=5 // pred_fallthru
        _
      %p655 = scmp.le.s32.totalorder 2, %s13
      // Predicated region
      $region41: #{_patch_merge_impl.1} parent=5 // pred_check
        %p656 = pneg %p655
      $region42: #{_patch_merge_impl.1} parent=5 // pred_check_branch
        %658 = sbr.rel (%p656) target = $region44
      $region43: #{_patch_merge_impl.1} parent=5 // pred_region
        %s659 = ssub.s32 %s13, 2
        // Predicated region
        $region45: #{_patch_merge_impl.1} parent=43 // pred_check
          %p660 = pneg %p131
        $region46: #{_patch_merge_impl.1} parent=43 // pred_check_branch
          %662 = sbr.rel (%p660) target = $region48
        $region47: #{_patch_merge_impl.1} parent=43 // pred_region
          %s663 = sand.u32 %s116, 1
          %s664 = scalar_lea.sflag [#allocation3], %s663
          %s665 = sand.u32 %s116, 1
          %s666 = smul.addr %s665, 64
          %s667 = scalar_lea.vmem [#allocation2], %s666
          %668 = dma.done %s664, 1024
        $region48: #{_patch_merge_impl.1} parent=43 // pred_fallthru
          _
      $region44: #{_patch_merge_impl.1} parent=5 // pred_fallthru
        _
    $region6: #{_patch_merge_impl.1} parent=1 // loop_footer
      %s17 = sadd.s32 1, %s13
    $region7: #{_patch_merge_impl.1} parent=1 // loop_footer_branch
      %12 = sbr.rel target = $region3
    $region8: #{_patch_merge_impl.1} parent=1 // loop_exit
      _
    %669 = vsyncpa [#allocation3], 1
    %s670 = scalar_lea.sflag [#allocation3], 1
    %671 = vsyncpa %s670, 1

// kernel: _patch_merge_impl.1
$region0: #{_patch_merge_impl.1}
  #allocation0 [shape = 'u32[]', space=smem, size = 0x4, offset = 0x4, fixed_abs, tag = 'smem constant byte address 0x4 - core index']
  #allocation1 [shape = 'u32[144,128]{1,0:T(1,128)}', space=vmem, size = 0x12000, scoped, tag = 'internal scratch']
  %s0 = inlined_call_operand.vmem [shape: f32[256,8], index: 0, kind: input, shape index: {}]
  %s1 = inlined_call_operand.vmem [shape: bf16[16,128], index: 1, kind: input, shape index: {}]
  %s2 = inlined_call_operand.vmem [shape: f32[1,128], index: 2, kind: input, shape index: {}]
  %s3 = inlined_call_operand.vmem [shape: f32[1,128], index: 3, kind: input, shape index: {}]
  %s4 = inlined_call_operand.hbm [shape: f32[128,128], index: 4, kind: output, shape index: {}]
  %s5 = sld [smem:[#allocation0]]
  $region49: #{_patch_merge_impl.1} parent=0
    _
  %s7 = ssub.s32 1, %s5
  %s8 = scalar_select 0, %s7, %s5
  $region1: #{_patch_merge_impl.1} parent=0
    #allocation2 [shape = 'u8[65536]{0}', space=vmem, size = 0x10000, scoped, tag = 'output window, operand 0']
    #allocation3 [shape = 's32[2]{0}', space=sflag, size = 0x8, scoped, tag = 'scoped memory for _patch_merge_impl.1']
    %9 = vsyncpa [#allocation3], 0
    %s10 = scalar_lea.sflag [#allocation3], 1
    %11 = vsyncpa %s10, 0
    loop: start=0, step=1, limit=4
    $region2: #{_patch_merge_impl.1} parent=1 // loop_pre_header
      _
    $region3: #{_patch_merge_impl.1} parent=1 // loop_header
      %s13 = sphi 0, %s17
      %p14 = scmp.ge.s32.totalorder %s13, 4
      %s23 = sphi 0, %s25
      %s26 = sphi 0, %s23
      %s27 = sphi 0, %s26
      %s43 = sphi 0, %s27
      %s47 = sphi 0, %s47
      %s49 = sphi 0, %s47
      %s50 = sphi 0, %s49
      %s64 = sphi 0, %s50
      %s68 = sphi 0, %s68
      %s70 = sphi 0, %s68
      %s71 = sphi 0, %s70
      %s85 = sphi 0, %s71
      %s89 = sphi 0, %s89
      %s91 = sphi 0, %s89
      %s92 = sphi 0, %s91
      %s106 = sphi 0, %s92
      %s112 = sphi 0, %s114
      %s115 = sphi 0, %s112
      %s116 = sphi 0, %s115
      %s132 = sphi 0, %s116
    $region4: #{_patch_merge_impl.1} parent=1 // loop_header_branch
      %16 = sbr.rel (%p14) target = $region8
    $region5: #{_patch_merge_impl.1} parent=1 // loop_body
      %s18 = ssub.s32 %s13, 1
      %s19 = ssub.s32 %s13, 2
      %s20 = sadd.s32 %s13, 1
      %s21 = ssub.s32 %s13, %s20
      %p22 = scmp.eq.s32.totalorder %s21, 0
      %s24 = sadd.s32 %s23, 1
      %s25 = scalar_select %p22, %s23, %s24
      %p28 = pneg %p22
      %p29 = scmp.eq.s32.totalorder %s13, 1
      %p30 = por %p28, %p29
      %p31 = scmp.ne.s32.totalorder %s23, %s26
      %p32 = scmp.eq.s32.totalorder %s13, 0
      %p33 = por %p31, %p32
      %p34 = scmp.ne.s32.totalorder %s23, %s26
      %p35 = scmp.eq.s32.totalorder %s18, 1
      %p36 = por %p34, %p35
      %p37 = scmp.ne.s32.totalorder %s26, %s27
      %p38 = scmp.eq.s32.totalorder %s18, 0
      %p39 = por %p37, %p38
      %p40 = scmp.ne.s32.totalorder %s26, %s27
      %p41 = scmp.eq.s32.totalorder %s19, 1
      %p42 = por %p40, %p41
      %p44 = scmp.ne.s32.totalorder %s27, %s43
      %p45 = scmp.eq.s32.totalorder %s19, 0
      %p46 = por %p44, %p45
      %s48 = sadd.s32 %s47, 1
      %p51 = scmp.eq.s32.totalorder %s13, 1
      %p52 = scmp.ne.s32.totalorder %s47, %s49
      %p53 = scmp.eq.s32.totalorder %s13, 0
      %p54 = por %p52, %p53
      %p55 = scmp.ne.s32.totalorder %s47, %s49
      %p56 = scmp.eq.s32.totalorder %s18, 1
      %p57 = por %p55, %p56
      %p58 = scmp.ne.s32.totalorder %s49, %s50
      %p59 = scmp.eq.s32.totalorder %s18, 0
      %p60 = por %p58, %p59
      %p61 = scmp.ne.s32.totalorder %s49, %s50
      %p62 = scmp.eq.s32.totalorder %s19, 1
      %p63 = por %p61, %p62
      %p65 = scmp.ne.s32.totalorder %s50, %s64
      %p66 = scmp.eq.s32.totalorder %s19, 0
      %p67 = por %p65, %p66
      %s69 = sadd.s32 %s68, 1
      %p72 = scmp.eq.s32.totalorder %s13, 1
      %p73 = scmp.ne.s32.totalorder %s68, %s70
      %p74 = scmp.eq.s32.totalorder %s13, 0
      %p75 = por %p73, %p74
      %p76 = scmp.ne.s32.totalorder %s68, %s70
      %p77 = scmp.eq.s32.totalorder %s18, 1
      %p78 = por %p76, %p77
      %p79 = scmp.ne.s32.totalorder %s70, %s71
      %p80 = scmp.eq.s32.totalorder %s18, 0
      %p81 = por %p79, %p80
      %p82 = scmp.ne.s32.totalorder %s70, %s71
      %p83 = scmp.eq.s32.totalorder %s19, 1
      %p84 = por %p82, %p83
      %p86 = scmp.ne.s32.totalorder %s71, %s85
      %p87 = scmp.eq.s32.totalorder %s19, 0
      %p88 = por %p86, %p87
      %s90 = sadd.s32 %s89, 1
      %p93 = scmp.eq.s32.totalorder %s13, 1
      %p94 = scmp.ne.s32.totalorder %s89, %s91
      %p95 = scmp.eq.s32.totalorder %s13, 0
      %p96 = por %p94, %p95
      %p97 = scmp.ne.s32.totalorder %s89, %s91
      %p98 = scmp.eq.s32.totalorder %s18, 1
      %p99 = por %p97, %p98
      %p100 = scmp.ne.s32.totalorder %s91, %s92
      %p101 = scmp.eq.s32.totalorder %s18, 0
      %p102 = por %p100, %p101
      %p103 = scmp.ne.s32.totalorder %s91, %s92
      %p104 = scmp.eq.s32.totalorder %s19, 1
      %p105 = por %p103, %p104
      %p107 = scmp.ne.s32.totalorder %s92, %s106
      %p108 = scmp.eq.s32.totalorder %s19, 0
      %p109 = por %p107, %p108
      %s110 = ssub.s32 %s13, %s20
      %p111 = scmp.eq.s32.totalorder %s110, 0
      %s113 = sadd.s32 %s112, 1
      %s114 = scalar_select %p111, %s112, %s113
      %p117 = pneg %p111
      %p118 = scmp.eq.s32.totalorder %s13, 1
      %p119 = por %p117, %p118
      %p120 = scmp.ne.s32.totalorder %s112, %s115
      %p121 = scmp.eq.s32.totalorder %s13, 0
      %p122 = por %p120, %p121
      %p123 = scmp.ne.s32.totalorder %s112, %s115
      %p124 = scmp.eq.s32.totalorder %s18, 1
      %p125 = por %p123, %p124
      %p126 = scmp.ne.s32.totalorder %s115, %s116
      %p127 = scmp.eq.s32.totalorder %s18, 0
      %p128 = por %p126, %p127
      %p129 = scmp.ne.s32.totalorder %s115, %s116
      %p130 = scmp.eq.s32.totalorder %s19, 1
      %p131 = por %p129, %p130
      %p133 = scmp.ne.s32.totalorder %s116, %s132
      %p134 = scmp.eq.s32.totalorder %s19, 0
      %p135 = por %p133, %p134
      %p136 = scmp.le.s32.totalorder 1, %s13
      %p137 = scmp.lt.s32.totalorder %s13, 3
      %p138 = pnand %p136, %p137
      %p139 = pneg %p138
      // Predicated region
      $region9: #{_patch_merge_impl.1} parent=5 // pred_check
        _
      $region10: #{_patch_merge_impl.1} parent=5 // pred_check_branch
        %141 = sbr.rel (%p138) target = $region12
      $region11: #{_patch_merge_impl.1} parent=5 // pred_region
        %s142 = ssub.s32 %s13, 1
        // Predicated region
        $region13: #{_patch_merge_impl.1} parent=11 // pred_check
          %p143 = pneg %p60
        $region14: #{_patch_merge_impl.1} parent=11 // pred_check_branch
          %145 = sbr.rel (%p143) target = $region16
        $region15: #{_patch_merge_impl.1} parent=11 // pred_region
          _
        $region16: #{_patch_merge_impl.1} parent=11 // pred_fallthru
          _
        // Predicated region
        $region17: #{_patch_merge_impl.1} parent=11 // pred_check
          %p146 = pneg %p81
        $region18: #{_patch_merge_impl.1} parent=11 // pred_check_branch
          %148 = sbr.rel (%p146) target = $region20
        $region19: #{_patch_merge_impl.1} parent=11 // pred_region
          _
        $region20: #{_patch_merge_impl.1} parent=11 // pred_fallthru
          _
        // Predicated region
        $region21: #{_patch_merge_impl.1} parent=11 // pred_check
          %p149 = pneg %p102
        $region22: #{_patch_merge_impl.1} parent=11 // pred_check_branch
          %151 = sbr.rel (%p149) target = $region24
        $region23: #{_patch_merge_impl.1} parent=11 // pred_region
          _
        $region24: #{_patch_merge_impl.1} parent=11 // pred_fallthru
          _
      $region12: #{_patch_merge_impl.1} parent=5 // pred_fallthru
        _
      %p152 = scmp.lt.s32.totalorder %s13, 2
      // Predicated region
      $region25: #{_patch_merge_impl.1} parent=5 // pred_check
        %p153 = pneg %p152
      $region26: #{_patch_merge_impl.1} parent=5 // pred_check_branch
        %155 = sbr.rel (%p153) target = $region28
      $region27: #{_patch_merge_impl.1} parent=5 // pred_region
        // Predicated region
        $region29: #{_patch_merge_impl.1} parent=27 // pred_check
          %p156 = pneg %p33
        $region30: #{_patch_merge_impl.1} parent=27 // pred_check_branch
          %158 = sbr.rel (%p156) target = $region32
        $region31: #{_patch_merge_impl.1} parent=27 // pred_region
          %s159 = smul.u32 16, %s13
          %p160 = scmp.lt.s32.totalorder %s159, 31
          %s161 = scalar_select %p160, %s159, 31
          %s162 = smul.addr %s161, 8
          %s163 = scalar_lea.vmem %s0, %s162
          %s164 = smul.u32 16, %s13
        $region32: #{_patch_merge_impl.1} parent=27 // pred_fallthru
          _
      $region28: #{_patch_merge_impl.1} parent=5 // pred_fallthru
        _
      %p165 = scmp.le.s32.totalorder 1, %s13
      %p166 = scmp.lt.s32.totalorder %s13, 3
      %p167 = pnand %p165, %p166
      %p168 = pneg %p167
      // Predicated region
      $region33: #{_patch_merge_impl.1} parent=5 // pred_check
        _
      $region34: #{_patch_merge_impl.1} parent=5 // pred_check_branch
        %170 = sbr.rel (%p167) target = $region36
      $region35: #{_patch_merge_impl.1} parent=5 // pred_region
        %s171 = ssub.s32 %s13, 1
        %s172 = smul.u32 16, %s18
        %p173 = scmp.lt.s32.totalorder %s172, 31
        %s174 = scalar_select %p173, %s172, 31
        %s175 = smul.addr %s174, 8
        %s176 = scalar_lea.vmem %s0, %s175
        %p177 = pneg %p39
        %p178 = pneg %p36
        %p179 = pneg %p60
        %p180 = pneg %p57
        %p181 = pneg %p81
        %p182 = pneg %p78
        %p183 = pneg %p102
        %p184 = pneg %p99
        %p185 = pneg %p128
        %p186 = pneg %p125
        %s187 = sand.u32 %s115, 1
        %s188 = scalar_lea.sflag [#allocation3], %s187
        %s189 = sand.u32 %s115, 1
        %s190 = smul.addr %s189, 64
        %s191 = scalar_lea.vmem [#allocation2], %s190
        %s192 = smul.u32 16, %s18
        %p193 = scmp.lt.s32.totalorder %s192, 31
        %s194 = scalar_select %p193, %s192, 31
        %s195 = smul.addr %s194, 8
        %s196 = scalar_lea.vmem %s0, %s195
        %s197 = smul.u32 16, %s18
        %s198 = smul.u32 8, %s18
        %v200 = vld [vmem:[%s196] sm:$0xff]
        %v201 = vld [vmem:[%s196 + $0x8] sm:$0xff]
        %v202 = vld [vmem:[%s196 + $0x10] sm:$0xff]
        %v203 = vld [vmem:[%s196 + $0x18] sm:$0xff]
        %v204 = vld [vmem:[%s196 + $0x20] sm:$0xff]
        %v205 = vld [vmem:[%s196 + $0x28] sm:$0xff]
        %v206 = vld [vmem:[%s196 + $0x30] sm:$0xff]
        %v207 = vld [vmem:[%s196 + $0x38] sm:$0xff]
        %v208 = vld [vmem:[%s196 + $0x40] sm:$0xff]
        %v209 = vld [vmem:[%s196 + $0x48] sm:$0xff]
        %v210 = vld [vmem:[%s196 + $0x50] sm:$0xff]
        %v211 = vld [vmem:[%s196 + $0x58] sm:$0xff]
        %v212 = vld [vmem:[%s196 + $0x60] sm:$0xff]
        %v213 = vld [vmem:[%s196 + $0x68] sm:$0xff]
        %v214 = vld [vmem:[%s196 + $0x70] sm:$0xff]
        %v215 = vld [vmem:[%s196 + $0x78] sm:$0xff]
        %vm216 = vcmask 64512
        %v217 = vsel %vm216, %v200, 0.0
        %218 = vadd.xlane.f32.xlu0 %v217
        %v219 = vpop.xlane.xlu0 %218
        %v220 = vsel %vm216, %v202, 0.0
        %221 = vadd.xlane.f32.xlu0 %v220
        %v222 = vpop.xlane.xlu0 %221
        %v223 = vsel %vm216, %v204, 0.0
        %224 = vadd.xlane.f32.xlu0 %v223
        %v225 = vpop.xlane.xlu0 %224
        %v226 = vsel %vm216, %v206, 0.0
        %227 = vadd.xlane.f32.xlu0 %v226
        %v228 = vpop.xlane.xlu0 %227
        %v229 = vsel %vm216, %v208, 0.0
        %230 = vadd.xlane.f32.xlu0 %v229
        %v231 = vpop.xlane.xlu0 %230
        %v232 = vsel %vm216, %v210, 0.0
        %233 = vadd.xlane.f32.xlu0 %v232
        %v234 = vpop.xlane.xlu0 %233
        %v235 = vsel %vm216, %v212, 0.0
        %236 = vadd.xlane.f32.xlu0 %v235
        %v237 = vpop.xlane.xlu0 %236
        %v238 = vsel %vm216, %v214, 0.0
        %239 = vadd.xlane.f32.xlu0 %v238
        %v240 = vpop.xlane.xlu0 %239
        %v241 = vadd.f32 %v219, 0.0
        %v242 = vadd.f32 %v222, 0.0
        %v243 = vadd.f32 %v225, 0.0
        %v244 = vadd.f32 %v228, 0.0
        %v245 = vadd.f32 %v231, 0.0
        %v246 = vadd.f32 %v234, 0.0
        %v247 = vadd.f32 %v237, 0.0
        %v248 = vadd.f32 %v240, 0.0
        %v249 = vmul.f32 %v200, %v200
        %v250 = vmul.f32 %v202, %v202
        %v251 = vmul.f32 %v204, %v204
        %v252 = vmul.f32 %v206, %v206
        %v253 = vmul.f32 %v208, %v208
        %v254 = vmul.f32 %v210, %v210
        %v255 = vmul.f32 %v212, %v212
        %v256 = vmul.f32 %v214, %v214
        %v257 = vsel %vm216, %v249, 0.0
        %258 = vadd.xlane.f32.xlu0 %v257
        %v259 = vpop.xlane.xlu0 %258
        %v260 = vsel %vm216, %v250, 0.0
        %261 = vadd.xlane.f32.xlu0 %v260
        %v262 = vpop.xlane.xlu0 %261
        %v263 = vsel %vm216, %v251, 0.0
        %264 = vadd.xlane.f32.xlu0 %v263
        %v265 = vpop.xlane.xlu0 %264
        %v266 = vsel %vm216, %v252, 0.0
        %267 = vadd.xlane.f32.xlu0 %v266
        %v268 = vpop.xlane.xlu0 %267
        %v269 = vsel %vm216, %v253, 0.0
        %270 = vadd.xlane.f32.xlu0 %v269
        %v271 = vpop.xlane.xlu0 %270
        %v272 = vsel %vm216, %v254, 0.0
        %273 = vadd.xlane.f32.xlu0 %v272
        %v274 = vpop.xlane.xlu0 %273
        %v275 = vsel %vm216, %v255, 0.0
        %276 = vadd.xlane.f32.xlu0 %v275
        %v277 = vpop.xlane.xlu0 %276
        %v278 = vsel %vm216, %v256, 0.0
        %279 = vadd.xlane.f32.xlu0 %v278
        %v280 = vpop.xlane.xlu0 %279
        %v281 = vadd.f32 %v259, 0.0
        %v282 = vadd.f32 %v262, 0.0
        %v283 = vadd.f32 %v265, 0.0
        %v284 = vadd.f32 %v268, 0.0
        %v285 = vadd.f32 %v271, 0.0
        %v286 = vadd.f32 %v274, 0.0
        %v287 = vadd.f32 %v277, 0.0
        %v288 = vadd.f32 %v280, 0.0
        %v289 = vpack.c.bf16 %v202, %v200
        %v290 = vpack.c.bf16 %v206, %v204
        %v291 = vpack.c.bf16 %v210, %v208
        %v292 = vpack.c.bf16 %v214, %v212
        %v293 = vld [vmem:[%s1] sm:$0xf]
        %v294 = vsel %vm216, %v201, 0.0
        %295 = vadd.xlane.f32.xlu0 %v294
        %v296 = vpop.xlane.xlu0 %295
        %v297 = vsel %vm216, %v203, 0.0
        %298 = vadd.xlane.f32.xlu0 %v297
        %v299 = vpop.xlane.xlu0 %298
        %v300 = vsel %vm216, %v205, 0.0
        %301 = vadd.xlane.f32.xlu0 %v300
        %v302 = vpop.xlane.xlu0 %301
        %v303 = vsel %vm216, %v207, 0.0
        %304 = vadd.xlane.f32.xlu0 %v303
        %v305 = vpop.xlane.xlu0 %304
        %v306 = vsel %vm216, %v209, 0.0
        %307 = vadd.xlane.f32.xlu0 %v306
        %v308 = vpop.xlane.xlu0 %307
        %v309 = vsel %vm216, %v211, 0.0
        %310 = vadd.xlane.f32.xlu0 %v309
        %v311 = vpop.xlane.xlu0 %310
        %v312 = vsel %vm216, %v213, 0.0
        %313 = vadd.xlane.f32.xlu0 %v312
        %v314 = vpop.xlane.xlu0 %313
        %v315 = vsel %vm216, %v215, 0.0
        %316 = vadd.xlane.f32.xlu0 %v315
        %v317 = vpop.xlane.xlu0 %316
        %v318 = vadd.f32 %v241, %v296
        %v319 = vadd.f32 %v242, %v299
        %v320 = vadd.f32 %v243, %v302
        %v321 = vadd.f32 %v244, %v305
        %v322 = vadd.f32 %v245, %v308
        %v323 = vadd.f32 %v246, %v311
        %v324 = vadd.f32 %v247, %v314
        %v325 = vadd.f32 %v248, %v317
        %v326 = vmul.f32 %v201, %v201
        %v327 = vmul.f32 %v203, %v203
        %v328 = vmul.f32 %v205, %v205
        %v329 = vmul.f32 %v207, %v207
        %v330 = vmul.f32 %v209, %v209
        %v331 = vmul.f32 %v211, %v211
        %v332 = vmul.f32 %v213, %v213
        %v333 = vmul.f32 %v215, %v215
        %v334 = vsel %vm216, %v326, 0.0
        %335 = vadd.xlane.f32.xlu0 %v334
        %v336 = vpop.xlane.xlu0 %335
        %v337 = vsel %vm216, %v327, 0.0
        %338 = vadd.xlane.f32.xlu0 %v337
        %v339 = vpop.xlane.xlu0 %338
        %v340 = vsel %vm216, %v328, 0.0
        %341 = vadd.xlane.f32.xlu0 %v340
        %v342 = vpop.xlane.xlu0 %341
        %v343 = vsel %vm216, %v329, 0.0
        %344 = vadd.xlane.f32.xlu0 %v343
        %v345 = vpop.xlane.xlu0 %344
        %v346 = vsel %vm216, %v330, 0.0
        %347 = vadd.xlane.f32.xlu0 %v346
        %v348 = vpop.xlane.xlu0 %347
        %v349 = vsel %vm216, %v331, 0.0
        %350 = vadd.xlane.f32.xlu0 %v349
        %v351 = vpop.xlane.xlu0 %350
        %v352 = vsel %vm216, %v332, 0.0
        %353 = vadd.xlane.f32.xlu0 %v352
        %v354 = vpop.xlane.xlu0 %353
        %v355 = vsel %vm216, %v333, 0.0
        %356 = vadd.xlane.f32.xlu0 %v355
        %v357 = vpop.xlane.xlu0 %356
        %v358 = vadd.f32 %v281, %v336
        %v359 = vadd.f32 %v282, %v339
        %v360 = vadd.f32 %v283, %v342
        %v361 = vadd.f32 %v284, %v345
        %v362 = vadd.f32 %v285, %v348
        %v363 = vadd.f32 %v286, %v351
        %v364 = vadd.f32 %v287, %v354
        %v365 = vadd.f32 %v288, %v357
        %v366 = vpack.c.bf16 %v203, %v201
        %v367 = vpack.c.bf16 %v207, %v205
        %v368 = vpack.c.bf16 %v211, %v209
        %v369 = vpack.c.bf16 %v215, %v213
        %v370 = vld [vmem:[%s1 + $0x4] sm:$0xf]
        %v372 = vsel %vm216, %v366, 0
        %v375 = vsel %vm216, %v367, 0
        %v378 = vsel %vm216, %v368, 0
        %v381 = vsel %vm216, %v369, 0
        %vm383 = vcmask 1043456
        %v385 = vsel %vm383, %v370, 0
        %387 = vmatprep.subr.bf16.mxu0 0
        %388 = vmatpush1.bf16.msra.mxu0 0
        %389 = vmatprep.subr.bf16.mxu0 0
        %390 = vmatpush1.bf16.msra.mxu0 0
        %391 = vmatprep.subr.bf16.mxu0 0
        %392 = vmatpush1.bf16.msra.mxu0 0
        %393 = vmatprep.subr.bf16.mxu0 0
        %394 = vmatpush1.bf16.msra.mxu0 0
        %395 = vmatprep.subr.bf16.mxu0 0
        %396 = vmatpush1.bf16.msra.mxu0 0
        %397 = vmatprep.subr.bf16.mxu0 0
        %398 = vmatpush1.bf16.msra.mxu0 0
        %399 = vmatprep.subr.bf16.mxu0 0
        %400 = vmatpush1.bf16.msra.mxu0 0
        %401 = vmatprep.subr.bf16.mxu0 0
        %402 = vmatpush1.bf16.msra.mxu0 %v385
        %403 = vmatprep.subr.bf16.mxu0 0
        %404 = vmatpush2.bf16.msra.mxu0 0
        %405 = vmatprep.subr.bf16.mxu0 0
        %406 = vmatpush2.bf16.msra.mxu0 0
        %407 = vmatprep.subr.bf16.mxu0 0
        %408 = vmatpush2.bf16.msra.mxu0 0
        %409 = vmatprep.subr.bf16.mxu0 0
        %410 = vmatpush2.bf16.msra.mxu0 0
        %411 = vmatprep.subr.bf16.mxu0 0
        %412 = vmatpush2.bf16.msra.mxu0 0
        %413 = vmatprep.subr.bf16.mxu0 0
        %414 = vmatpush2.bf16.msra.mxu0 0
        %415 = vmatprep.subr.bf16.mxu0 0
        %416 = vmatpush2.bf16.msra.mxu0 0
        %417 = vmatprep.subr.bf16.mxu0 0
        %418 = vmatpush2.bf16.msra.mxu0 0
        %419 = vmatprep.mubr.bf16.mxu0 0
        %420 = vmatmul.mubr.bf16.gmra.mxu0 %v372
        %v421 = vpop.f32.mrf.mxu0
        %v422 = vadd.f32 0.0, %v421
        %v423 = vpop.f32.mrf.mxu0
        %v424 = vpop.f32.mrf.mxu0
        %v425 = vadd.f32 0.0, %v424
        %v426 = vpop.f32.mrf.mxu0
        %427 = vmatprep.mubr.bf16.mxu0 0
        %428 = vmatmul.mubr.bf16.gmra.mxu0 %v375
        %v429 = vpop.f32.mrf.mxu0
        %v430 = vadd.f32 0.0, %v429
        %v431 = vpop.f32.mrf.mxu0
        %v432 = vpop.f32.mrf.mxu0
        %v433 = vadd.f32 0.0, %v432
        %v434 = vpop.f32.mrf.mxu0
        %435 = vmatprep.mubr.bf16.mxu0 0
        %436 = vmatmul.mubr.bf16.gmra.mxu0 %v378
        %v437 = vpop.f32.mrf.mxu0
        %v438 = vadd.f32 0.0, %v437
        %v439 = vpop.f32.mrf.mxu0
        %v440 = vpop.f32.mrf.mxu0
        %v441 = vadd.f32 0.0, %v440
        %v442 = vpop.f32.mrf.mxu0
        %443 = vmatprep.mubr.bf16.mxu0 0
        %444 = vmatmul.mubr.bf16.gmra.mxu0 %v381
        %v445 = vpop.f32.mrf.mxu0
        %v446 = vadd.f32 0.0, %v445
        %v447 = vpop.f32.mrf.mxu0
        %v448 = vpop.f32.mrf.mxu0
        %v449 = vadd.f32 0.0, %v448
        %v450 = vpop.f32.mrf.mxu0
        %451 = vdwg.mxu0
        %v453 = vsel %vm216, %v289, 0
        %v456 = vsel %vm216, %v290, 0
        %v459 = vsel %vm216, %v291, 0
        %v462 = vsel %vm216, %v292, 0
        %v465 = vsel %vm383, %v293, 0
        %467 = vmatprep.subr.bf16.mxu0 0
        %468 = vmatpush1.bf16.msra.mxu0 0
        %469 = vmatprep.subr.bf16.mxu0 0
        %470 = vmatpush1.bf16.msra.mxu0 0
        %471 = vmatprep.subr.bf16.mxu0 0
        %472 = vmatpush1.bf16.msra.mxu0 0
        %473 = vmatprep.subr.bf16.mxu0 0
        %474 = vmatpush1.bf16.msra.mxu0 0
        %475 = vmatprep.subr.bf16.mxu0 0
        %476 = vmatpush1.bf16.msra.mxu0 0
        %477 = vmatprep.subr.bf16.mxu0 0
        %478 = vmatpush1.bf16.msra.mxu0 0
        %479 = vmatprep.subr.bf16.mxu0 0
        %480 = vmatpush1.bf16.msra.mxu0 0
        %481 = vmatprep.subr.bf16.mxu0 0
        %482 = vmatpush1.bf16.msra.mxu0 %v465
        %483 = vmatprep.subr.bf16.mxu0 0
        %484 = vmatpush2.bf16.msra.mxu0 0
        %485 = vmatprep.subr.bf16.mxu0 0
        %486 = vmatpush2.bf16.msra.mxu0 0
        %487 = vmatprep.subr.bf16.mxu0 0
        %488 = vmatpush2.bf16.msra.mxu0 0
        %489 = vmatprep.subr.bf16.mxu0 0
        %490 = vmatpush2.bf16.msra.mxu0 0
        %491 = vmatprep.subr.bf16.mxu0 0
        %492 = vmatpush2.bf16.msra.mxu0 0
        %493 = vmatprep.subr.bf16.mxu0 0
        %494 = vmatpush2.bf16.msra.mxu0 0
        %495 = vmatprep.subr.bf16.mxu0 0
        %496 = vmatpush2.bf16.msra.mxu0 0
        %497 = vmatprep.subr.bf16.mxu0 0
        %498 = vmatpush2.bf16.msra.mxu0 0
        %499 = vmatprep.mubr.bf16.mxu0 0
        %500 = vmatmul.mubr.bf16.gmra.mxu0 %v453
        %v501 = vpop.f32.mrf.mxu0
        %v502 = vadd.f32 %v422, %v501
        %v503 = vpop.f32.mrf.mxu0
        %v504 = vpop.f32.mrf.mxu0
        %v505 = vadd.f32 %v425, %v504
        %v506 = vpop.f32.mrf.mxu0
        %507 = vmatprep.mubr.bf16.mxu0 0
        %508 = vmatmul.mubr.bf16.gmra.mxu0 %v456
        %v509 = vpop.f32.mrf.mxu0
        %v510 = vadd.f32 %v430, %v509
        %v511 = vpop.f32.mrf.mxu0
        %v512 = vpop.f32.mrf.mxu0
        %v513 = vadd.f32 %v433, %v512
        %v514 = vpop.f32.mrf.mxu0
        %515 = vmatprep.mubr.bf16.mxu0 0
        %516 = vmatmul.mubr.bf16.gmra.mxu0 %v459
        %v517 = vpop.f32.mrf.mxu0
        %v518 = vadd.f32 %v438, %v517
        %v519 = vpop.f32.mrf.mxu0
        %v520 = vpop.f32.mrf.mxu0
        %v521 = vadd.f32 %v441, %v520
        %v522 = vpop.f32.mrf.mxu0
        %523 = vmatprep.mubr.bf16.mxu0 0
        %524 = vmatmul.mubr.bf16.gmra.mxu0 %v462
        %v525 = vpop.f32.mrf.mxu0
        %v526 = vadd.f32 %v446, %v525
        %v527 = vpop.f32.mrf.mxu0
        %v528 = vpop.f32.mrf.mxu0
        %v529 = vadd.f32 %v449, %v528
        %v530 = vpop.f32.mrf.mxu0
        %531 = vdwg.mxu0
        %v532 = vmul.f32 %v318, 0.0625
        %v533 = vmul.f32 %v319, 0.0625
        %v534 = vmul.f32 %v320, 0.0625
        %v535 = vmul.f32 %v321, 0.0625
        %v536 = vmul.f32 %v322, 0.0625
        %v537 = vmul.f32 %v323, 0.0625
        %v538 = vmul.f32 %v324, 0.0625
        %v539 = vmul.f32 %v325, 0.0625
        %v540 = vmul.f32 %v358, 0.0625
        %v541 = vmul.f32 %v359, 0.0625
        %v542 = vmul.f32 %v360, 0.0625
        %v543 = vmul.f32 %v361, 0.0625
        %v544 = vmul.f32 %v362, 0.0625
        %v545 = vmul.f32 %v363, 0.0625
        %v546 = vmul.f32 %v364, 0.0625
        %v547 = vmul.f32 %v365, 0.0625
        %v548 = vmul.f32 %v532, %v532
        %v549 = vmul.f32 %v533, %v533
        %v550 = vmul.f32 %v534, %v534
        %v551 = vmul.f32 %v535, %v535
        %v552 = vmul.f32 %v536, %v536
        %v553 = vmul.f32 %v537, %v537
        %v554 = vmul.f32 %v538, %v538
        %v555 = vmul.f32 %v539, %v539
        %v556 = vsub.f32 %v540, %v548
        %v557 = vsub.f32 %v541, %v549
        %v558 = vsub.f32 %v542, %v550
        %v559 = vsub.f32 %v543, %v551
        %v560 = vsub.f32 %v544, %v552
        %v561 = vsub.f32 %v545, %v553
        %v562 = vsub.f32 %v546, %v554
        %v563 = vsub.f32 %v547, %v555
        %v564 = vadd.f32 %v556, 1e-05
        %v565 = vadd.f32 %v557, 1e-05
        %v566 = vadd.f32 %v558, 1e-05
        %v567 = vadd.f32 %v559, 1e-05
        %v568 = vadd.f32 %v560, 1e-05
        %v569 = vadd.f32 %v561, 1e-05
        %v570 = vadd.f32 %v562, 1e-05
        %v571 = vadd.f32 %v563, 1e-05
        %v572 = vrsqrt.pop %v564
        %v573 = vrsqrt.pop %v565
        %v574 = vrsqrt.pop %v566
        %v575 = vrsqrt.pop %v567
        %v576 = vrsqrt.pop %v568
        %v577 = vrsqrt.pop %v569
        %v578 = vrsqrt.pop %v570
        %v579 = vrsqrt.pop %v571
        %v580 = vld [vmem:[%s2] sm:$0x1]
        %v582 = vlaneseq
        %v583 = vshrl.u32 %v582, 7
        %v584 = vsub.s32 0, %v583
        %v585 = vrot.slane %v580, %v584
        %v587 = vmul.f32 %v532, %v585
        %v588 = vmul.f32 %v533, %v585
        %v589 = vmul.f32 %v534, %v585
        %v590 = vmul.f32 %v535, %v585
        %v591 = vmul.f32 %v536, %v585
        %v592 = vmul.f32 %v537, %v585
        %v593 = vmul.f32 %v538, %v585
        %v594 = vmul.f32 %v539, %v585
        %v595 = vsub.f32 %v502, %v587
        %v596 = vsub.f32 %v505, %v588
        %v597 = vsub.f32 %v510, %v589
        %v598 = vsub.f32 %v513, %v590
        %v599 = vsub.f32 %v518, %v591
        %v600 = vsub.f32 %v521, %v592
        %v601 = vsub.f32 %v526, %v593
        %v602 = vsub.f32 %v529, %v594
        %v603 = vmul.f32 %v595, %v572
        %v604 = vmul.f32 %v596, %v573
        %v605 = vmul.f32 %v597, %v574
        %v606 = vmul.f32 %v598, %v575
        %v607 = vmul.f32 %v599, %v576
        %v608 = vmul.f32 %v600, %v577
        %v609 = vmul.f32 %v601, %v578
        %v610 = vmul.f32 %v602, %v579
        %v611 = vld [vmem:[%s3] sm:$0x1]
        %v613 = vlaneseq
        %v614 = vshrl.u32 %v613, 7
        %v615 = vsub.s32 0, %v614
        %v616 = vrot.slane %v611, %v615
        %v618 = vadd.f32 %v603, %v616
        %v619 = vadd.f32 %v604, %v616
        %v620 = vadd.f32 %v605, %v616
        %v621 = vadd.f32 %v606, %v616
        %v622 = vadd.f32 %v607, %v616
        %v623 = vadd.f32 %v608, %v616
        %v624 = vadd.f32 %v609, %v616
        %v625 = vadd.f32 %v610, %v616
        %626 = vst [vmem:[%s191] sm:$0xff] %v618
        %627 = vst [vmem:[%s191 + $0x8] sm:$0xff] %v619
        %628 = vst [vmem:[%s191 + $0x10] sm:$0xff] %v620
        %629 = vst [vmem:[%s191 + $0x18] sm:$0xff] %v621
        %630 = vst [vmem:[%s191 + $0x20] sm:$0xff] %v622
        %631 = vst [vmem:[%s191 + $0x28] sm:$0xff] %v623
        %632 = vst [vmem:[%s191 + $0x30] sm:$0xff] %v624
        %633 = vst [vmem:[%s191 + $0x38] sm:$0xff] %v625
        %s634 = sand.u32 %s115, 1
        %s635 = scalar_lea.sflag [#allocation3], %s634
        %s636 = sand.u32 %s115, 1
        %s637 = smul.addr %s636, 64
        %s638 = scalar_lea.vmem [#allocation2], %s637
        // Predicated region
        $region37: #{_patch_merge_impl.1} parent=35 // pred_check
          %p639 = pneg %p125
        $region38: #{_patch_merge_impl.1} parent=35 // pred_check_branch
          %641 = sbr.rel (%p639) target = $region40
        $region39: #{_patch_merge_impl.1} parent=35 // pred_region
          %s642 = smul.u32 8, %s18
          %s644 = ssub.s32 1024, 1024
          %645 = vsyncadd %s635, %s644
          %s646 = smul.addr %s642, 128
          %s647 = scalar_lea.hbm %s4, %s646
          %s648 = sshll.u32 %s638, 4
          %s649 = int_to_ptr.vmem [resolvable:$true] %s648
          %654 = dma.vmem_to_hbm [thread:$0]  %s649, 1024, %s647, %s635, 128, 128, 8
        $region40: #{_patch_merge_impl.1} parent=35 // pred_fallthru
          _
      $region36: #{_patch_merge_impl.1} parent=5 // pred_fallthru
        _
      %p655 = scmp.le.s32.totalorder 2, %s13
      // Predicated region
      $region41: #{_patch_merge_impl.1} parent=5 // pred_check
        %p656 = pneg %p655
      $region42: #{_patch_merge_impl.1} parent=5 // pred_check_branch
        %658 = sbr.rel (%p656) target = $region44
      $region43: #{_patch_merge_impl.1} parent=5 // pred_region
        %s659 = ssub.s32 %s13, 2
        // Predicated region
        $region45: #{_patch_merge_impl.1} parent=43 // pred_check
          %p660 = pneg %p131
        $region46: #{_patch_merge_impl.1} parent=43 // pred_check_branch
          %662 = sbr.rel (%p660) target = $region48
        $region47: #{_patch_merge_impl.1} parent=43 // pred_region
          %s663 = sand.u32 %s116, 1
          %s664 = scalar_lea.sflag [#allocation3], %s663
          %s665 = sand.u32 %s116, 1
          %s666 = smul.addr %s665, 64
          %s667 = scalar_lea.vmem [#allocation2], %s666
          %668 = dma.done %s664, 1024
        $region48: #{_patch_merge_impl.1} parent=43 // pred_fallthru
          _
      $region44: #{_patch_merge_impl.1} parent=5 // pred_fallthru
        _
    $region6: #{_patch_merge_impl.1} parent=1 // loop_footer
      %s17 = sadd.s32 1, %s13
    $region7: #{_patch_merge_impl.1} parent=1 // loop_footer_branch
      %12 = sbr.rel target = $region3
    $region8: #{_patch_merge_impl.1} parent=1 // loop_exit
      _
    %669 = vsyncpa [#allocation3], 1
    %s670 = scalar_lea.sflag [#allocation3], 1
    %671 = vsyncpa %s670, 1

</llo_original>
